<compile_context>
chip_gen: v6e
topology: v6e:2x2x1
jax: 0.10.0
libtpu: 0.0.40
codegen_flags: <defaults>
</compile_context>

<pallas_src>
import jax
import jax.numpy as jnp
from jax.experimental import pallas as pl
from jax.experimental.pallas import tpu as pltpu


def _round_up(x, m):
    return ((x + m - 1) // m) * m


def _num_tensorcores():
    """Best-effort TensorCore count (v7x has 2 per chip); defaults to 1."""
    try:
        info = pltpu.get_tpu_info()
        for attr in ("num_cores", "core_count", "num_tensorcores", "tensorcore_count"):
            v = getattr(info, attr, None)
            if v:
                return int(v)
    except Exception:
        pass
    return 1


def lane_embedding_kernel(x_ref, w1_ref, b1_ref, w2_ref, b2_ref,
                          w3a_ref, w3b_ref, b3_ref, w4_ref, b4_ref,
                          out_ref):
    tb, enc_pad = out_ref.shape
    rows = x_ref.shape[0]          # == tb * n
    n = rows // tb

    x = x_ref[...]                                              # bf16 (tb*n, c_in)

    # first_conv: Conv(C_in->128)+BN folded -> ReLU -> Conv(128->256)
    h1 = jnp.dot(x, w1_ref[...], preferred_element_type=jnp.float32)
    h1 = jnp.maximum(h1 + b1_ref[...], 0.0)                     # f32 (tb*n, 128)
    f = jnp.dot(h1.astype(jnp.bfloat16), w2_ref[...],
                preferred_element_type=jnp.float32)
    f = f + b2_ref[...]                                         # f32 (tb*n, 256)

    # global max-pool over points (per batch element)
    g = jnp.max(f.reshape(tb, n, 256), axis=1)                  # f32 (tb, 256)

    # second_conv on concat([g, f], channels): split the 512-channel weight
    # into the part acting on g and the part acting on f (no materialized cat)
    gp = jnp.dot(g.astype(jnp.bfloat16), w3a_ref[...],
                 preferred_element_type=jnp.float32)            # (tb, 256)
    fp = jnp.dot(f.astype(jnp.bfloat16), w3b_ref[...],
                 preferred_element_type=jnp.float32)            # (tb*n, 256)
    h2 = jnp.maximum(gp[:, None, :] + fp.reshape(tb, n, 256) + b3_ref[...], 0.0)
    o = jnp.dot(h2.reshape(rows, 256).astype(jnp.bfloat16), w4_ref[...],
                preferred_element_type=jnp.float32)
    o = o + b4_ref[...]                                         # (tb*n, enc_pad)

    # final max-pool over points -> lane-dense (tb, enc_pad) unmasked store
    out_ref[...] = jnp.max(o.reshape(tb, n, enc_pad), axis=1)


def lane_embedding(x, params, encoder_channel, tb=None):
    """x: (bs, n, feat_channel) float32 -> (bs, encoder_channel) float32."""
    bs, n, c_in = x.shape
    w1t, b1, w2t, b2, w3at, w3bt, b3, w4t, b4 = params
    enc_pad = w4t.shape[1]

    if tb is None:
        # Per-row activation footprint (f32 intermediates, conservative):
        #   x(bf16, 2 bufs) + h1 + f(+bf16) + fp + h2(+bf16) + o
        bytes_per_row = (2 * c_in * 2
                         + 128 * 4
                         + 256 * (4 + 2)
                         + 256 * (4 + 4 + 2)
                         + enc_pad * 4)
        act_budget = 12 * 1024 * 1024               # safe on v5e/v6e/v7x
        target_rows = max(256, min(4096, act_budget // bytes_per_row))
        tb = max(8, min(_round_up(bs, 8), _round_up(max(1, target_rows // n), 8)))
        # Only force >=2 grid steps on multi-TensorCore chips (v7x); on
        # single-TC v5e/v6e the grid is a sequential loop and splitting is
        # pure per-step overhead.
        if _num_tensorcores() >= 2 and bs >= 2 and pl.cdiv(bs, tb) < 2:
            tb = max(8, _round_up(pl.cdiv(bs, 2), 8))

    num_tiles = pl.cdiv(bs, tb)
    bs_pad = num_tiles * tb

    # Pre-flatten to 2D (free reshape on a contiguous HBM array) so the kernel
    # block is a dense (tb*n, c_in) slab with no in-kernel relayout.
    xflat = x.astype(jnp.bfloat16).reshape(bs * n, c_in)
    if bs_pad != bs:
        # Padded batch rows are per-element independent and sliced off below.
        xflat = jnp.pad(xflat, ((0, (bs_pad - bs) * n), (0, 0)))

    # Weights/biases: constant index_map across the grid -> single buffer.
    resident = lambda a: pl.BlockSpec(a.shape, lambda b: (0,) * a.ndim,
                                      pipeline_mode=pl.Buffered(1))

    weights_bytes = sum(int(p.size) * p.dtype.itemsize for p in params)
    x_block_bytes = tb * n * c_in * 2
    out_block_bytes = tb * enc_pad * 4
    act_bytes = tb * n * (128 * 4 + 256 * (4 + 2) + 256 * (4 + 4 + 2) + enc_pad * 4)
    vmem_estimate = weights_bytes + 2 * x_block_bytes + 2 * out_block_bytes + act_bytes
    # Raise above v5e's 16 MiB scoped default; stay well under v7x's 64 MiB.
    vmem_limit = int(min(48 << 20, max(32 << 20, 2 * vmem_estimate)))

    flops = (2 * bs_pad * n * (c_in * 128 + 128 * 256 + 256 * 256 + 256 * enc_pad)
             + 2 * bs_pad * 256 * 256)
    bytes_accessed = (bs_pad * n * c_in * 2
                      + weights_bytes
                      + bs_pad * enc_pad * 4)

    out = pl.pallas_call(
        lane_embedding_kernel,
        out_shape=jax.ShapeDtypeStruct((bs_pad, enc_pad), jnp.float32),
        grid_spec=pltpu.PrefetchScalarGridSpec(
            num_scalar_prefetch=0,
            grid=(num_tiles,),
            in_specs=[
                pl.BlockSpec((tb * n, c_in), lambda b: (b, 0)),
                resident(w1t), resident(b1), resident(w2t), resident(b2),
                resident(w3at), resident(w3bt), resident(b3),
                resident(w4t), resident(b4),
            ],
            out_specs=pl.BlockSpec((tb, enc_pad), lambda b: (b, 0)),
        ),
        compiler_params=pltpu.CompilerParams(
            dimension_semantics=("parallel",),
            vmem_limit_bytes=vmem_limit),
        cost_estimate=pl.CostEstimate(flops=flops, transcendentals=0,
                                      bytes_accessed=bytes_accessed),
    )(xflat, w1t, b1, w2t, b2, w3at, w3bt, b3, w4t, b4)

    return out[:bs, :encoder_channel]


def make_params(key, feat_channel, encoder_channel):
    """Deterministic synthetic parameters; BN (eval mode) folded into convs.

    Weight matrices are returned pre-transposed (channels-last matmul),
    cast to bf16, and the final conv is zero-padded to a lane-dense
    (multiple-of-128) output width.  Biases stay f32.
    """
    ks = jax.random.split(key, 12)
    eps = 1e-5

    def u(k, shape, scale=0.1):
        return jax.random.uniform(k, shape, jnp.float32, -scale, scale)

    # first_conv
    w1 = u(ks[0], (128, feat_channel))        # Conv1d weight (out, in)
    b1 = u(ks[1], (128,))
    gamma1 = 1.0 + u(ks[2], (128,))
    beta1 = u(ks[3], (128,))
    mean1 = u(ks[4], (128,))
    var1 = 1.0 + jnp.abs(u(ks[5], (128,)))
    s1 = gamma1 / jnp.sqrt(var1 + eps)
    w1f = w1 * s1[:, None]
    b1f = s1 * (b1 - mean1) + beta1
    w2 = u(ks[6], (256, 128))
    b2 = u(ks[7], (256,))

    # second_conv
    w3 = u(ks[8], (256, 512))
    b3 = u(ks[9], (256,))
    gamma2 = 1.0 + u(ks[10], (256,))
    beta2 = u(ks[11], (256,))
    mean2 = u(jax.random.fold_in(key, 101), (256,))
    var2 = 1.0 + jnp.abs(u(jax.random.fold_in(key, 102), (256,)))
    s2 = gamma2 / jnp.sqrt(var2 + eps)
    w3f = w3 * s2[:, None]
    b3f = s2 * (b3 - mean2) + beta2
    w4 = u(jax.random.fold_in(key, 99), (encoder_channel, 256))
    b4 = u(jax.random.fold_in(key, 100), (encoder_channel,))

    # pad encoder_channel to a multiple of 128 for a lane-dense output store
    enc_pad = _round_up(encoder_channel, 128)
    w4p = jnp.zeros((enc_pad, 256), jnp.float32).at[:encoder_channel].set(w4)
    b4p = jnp.zeros((enc_pad,), jnp.float32).at[:encoder_channel].set(b4)

    bf = jnp.bfloat16
    # transpose for channels-last matmuls; split w3 into [global | feature]
    # (matches torch.cat([feature_global.expand(...), feature], dim=1) order)
    return (
        jnp.asarray(w1f.T, bf),             # (C_in, 128)
        b1f.reshape(1, 128),
        jnp.asarray(w2.T, bf),              # (128, 256)
        b2.reshape(1, 256),
        jnp.asarray(w3f[:, :256].T, bf),    # acts on global   (256, 256)
        jnp.asarray(w3f[:, 256:].T, bf),    # acts on feature  (256, 256)
        b3f.reshape(1, 256),
        jnp.asarray(w4p.T, bf),             # (256, enc_pad)
        b4p.reshape(1, enc_pad),
    )


def ref_forward(x, params, encoder_channel):
    """Pure-JAX reference mirroring the PyTorch forward (BN folded), using the
    same bf16-input / f32-accumulate matmul arithmetic as the kernel."""
    w1t, b1, w2t, b2, w3at, w3bt, b3, w4t, b4 = params
    bf = jnp.bfloat16
    mm = lambda a, b: jnp.matmul(a.astype(bf), b,
                                 preferred_element_type=jnp.float32)
    h1 = jnp.maximum(mm(x, w1t) + b1, 0.0)
    f = mm(h1, w2t) + b2                               # (bs, n, 256)
    g = jnp.max(f, axis=1, keepdims=True)              # (bs, 1, 256)
    h2 = jnp.maximum(mm(g, w3at) + mm(f, w3bt) + b3, 0.0)
    o = mm(h2, w4t) + b4                               # (bs, n, enc_pad)
    return jnp.max(o, axis=1)[:, :encoder_channel]     # (bs, enc)


if __name__ == "__main__":
    bs, n, feat_channel, encoder_channel = 4, 8, 16, 64

    key = jax.random.PRNGKey(0)
    kx, kp = jax.random.split(key)
    x = jax.random.normal(kx, (bs, n, feat_channel), jnp.float32)
    params = make_params(kp, feat_channel, encoder_channel)

    out = lane_embedding(x, params, encoder_channel)
    out = jax.block_until_ready(out)

    ref = ref_forward(x, params, encoder_channel)
    assert out.shape == (bs, encoder_channel)
    assert jnp.allclose(out, ref, atol=2e-3, rtol=2e-3), "mismatch vs reference"

    print("KERNEL_OK")
</pallas_src>

<mosaic_0001>
module attributes {stable_mosaic.version = 11 : i64} {
  func.func @lane_embedding_kernel(%arg0: i32, %arg1: memref<64x16xbf16, #tpu.memory_space<vmem>>, %arg2: memref<16x128xbf16, #tpu.memory_space<vmem>>, %arg3: memref<1x128xf32, #tpu.memory_space<vmem>>, %arg4: memref<128x256xbf16, #tpu.memory_space<vmem>>, %arg5: memref<1x256xf32, #tpu.memory_space<vmem>>, %arg6: memref<256x256xbf16, #tpu.memory_space<vmem>>, %arg7: memref<256x256xbf16, #tpu.memory_space<vmem>>, %arg8: memref<1x256xf32, #tpu.memory_space<vmem>>, %arg9: memref<256x128xbf16, #tpu.memory_space<vmem>>, %arg10: memref<1x128xf32, #tpu.memory_space<vmem>>, %arg11: memref<8x128xf32, #tpu.memory_space<vmem>>) attributes {dimension_semantics = [#tpu.dimension_semantics<parallel>], iteration_bounds = array<i64: 1>, scalar_prefetch = 0 : i64, scratch_operands = 0 : i64, tpu.core_type = #tpu.core_type<tc>, window_params = [{transform_indices = @transform_0, window_bounds = array<i64: 64, 16>}, {pipeline_mode = #tpu.pipeline_mode<synchronous>, transform_indices = @transform_1, window_bounds = array<i64: 16, 128>}, {pipeline_mode = #tpu.pipeline_mode<synchronous>, transform_indices = @transform_2, window_bounds = array<i64: 1, 128>}, {pipeline_mode = #tpu.pipeline_mode<synchronous>, transform_indices = @transform_3, window_bounds = array<i64: 128, 256>}, {pipeline_mode = #tpu.pipeline_mode<synchronous>, transform_indices = @transform_4, window_bounds = array<i64: 1, 256>}, {pipeline_mode = #tpu.pipeline_mode<synchronous>, transform_indices = @transform_5, window_bounds = array<i64: 256, 256>}, {pipeline_mode = #tpu.pipeline_mode<synchronous>, transform_indices = @transform_6, window_bounds = array<i64: 256, 256>}, {pipeline_mode = #tpu.pipeline_mode<synchronous>, transform_indices = @transform_7, window_bounds = array<i64: 1, 256>}, {pipeline_mode = #tpu.pipeline_mode<synchronous>, transform_indices = @transform_8, window_bounds = array<i64: 256, 128>}, {pipeline_mode = #tpu.pipeline_mode<synchronous>, transform_indices = @transform_9, window_bounds = array<i64: 1, 128>}, {transform_indices = @transform_10, window_bounds = array<i64: 8, 128>}]} {
    %c0 = arith.constant 0 : index
    %c0_0 = arith.constant 0 : index
    %0 = vector.load %arg1[%c0, %c0_0] : memref<64x16xbf16, #tpu.memory_space<vmem>>, vector<64x16xbf16>
    %c0_1 = arith.constant 0 : index
    %c0_2 = arith.constant 0 : index
    %1 = vector.load %arg2[%c0_1, %c0_2] : memref<16x128xbf16, #tpu.memory_space<vmem>>, vector<16x128xbf16>
    %cst = arith.constant dense<0.000000e+00> : vector<64x128xf32>
    %2 = tpu.matmul %0, %1, %cst {dimension_numbers = #tpu.dot_dimension_numbers<[1], [0], [0], [1], [0, 0, 1, 1], [], []>} : vector<64x16xbf16>, vector<16x128xbf16>, vector<64x128xf32> -> vector<64x128xf32>
    %c0_3 = arith.constant 0 : index
    %c0_4 = arith.constant 0 : index
    %3 = vector.load %arg3[%c0_3, %c0_4] : memref<1x128xf32, #tpu.memory_space<vmem>>, vector<1x128xf32>
    %4 = vector.broadcast %3 : vector<1x128xf32> to vector<64x128xf32>
    %5 = arith.addf %2, %4 : vector<64x128xf32>
    %cst_5 = arith.constant 0.000000e+00 : f32
    %6 = vector.broadcast %cst_5 : f32 to vector<64x128xf32>
    %7 = arith.maximumf %5, %6 : vector<64x128xf32>
    %8 = arith.truncf %7 : vector<64x128xf32> to vector<64x128xbf16>
    %c0_6 = arith.constant 0 : index
    %c0_7 = arith.constant 0 : index
    %9 = vector.load %arg4[%c0_6, %c0_7] : memref<128x256xbf16, #tpu.memory_space<vmem>>, vector<128x256xbf16>
    %cst_8 = arith.constant dense<0.000000e+00> : vector<64x256xf32>
    %10 = tpu.matmul %8, %9, %cst_8 {dimension_numbers = #tpu.dot_dimension_numbers<[1], [0], [0], [1], [0, 0, 1, 1], [], []>} : vector<64x128xbf16>, vector<128x256xbf16>, vector<64x256xf32> -> vector<64x256xf32>
    %c0_9 = arith.constant 0 : index
    %c0_10 = arith.constant 0 : index
    %11 = vector.load %arg5[%c0_9, %c0_10] : memref<1x256xf32, #tpu.memory_space<vmem>>, vector<1x256xf32>
    %12 = vector.broadcast %11 : vector<1x256xf32> to vector<64x256xf32>
    %13 = arith.addf %10, %12 : vector<64x256xf32>
    %14 = vector.shape_cast %13 : vector<64x256xf32> to vector<8x8x256xf32>
    %cst_11 = arith.constant dense<0xFF800000> : vector<8x256xf32>
    %15 = vector.multi_reduction <maximumf>, %14, %cst_11 [1] : vector<8x8x256xf32> to vector<8x256xf32>
    %16 = arith.truncf %15 : vector<8x256xf32> to vector<8x256xbf16>
    %c0_12 = arith.constant 0 : index
    %c0_13 = arith.constant 0 : index
    %17 = vector.load %arg6[%c0_12, %c0_13] : memref<256x256xbf16, #tpu.memory_space<vmem>>, vector<256x256xbf16>
    %cst_14 = arith.constant dense<0.000000e+00> : vector<8x256xf32>
    %18 = tpu.matmul %16, %17, %cst_14 {dimension_numbers = #tpu.dot_dimension_numbers<[1], [0], [0], [1], [0, 0, 1, 1], [], []>} : vector<8x256xbf16>, vector<256x256xbf16>, vector<8x256xf32> -> vector<8x256xf32>
    %19 = arith.truncf %13 : vector<64x256xf32> to vector<64x256xbf16>
    %c0_15 = arith.constant 0 : index
    %c0_16 = arith.constant 0 : index
    %20 = vector.load %arg7[%c0_15, %c0_16] : memref<256x256xbf16, #tpu.memory_space<vmem>>, vector<256x256xbf16>
    %cst_17 = arith.constant dense<0.000000e+00> : vector<64x256xf32>
    %21 = tpu.matmul %19, %20, %cst_17 {dimension_numbers = #tpu.dot_dimension_numbers<[1], [0], [0], [1], [0, 0, 1, 1], [], []>} : vector<64x256xbf16>, vector<256x256xbf16>, vector<64x256xf32> -> vector<64x256xf32>
    %22 = vector.shape_cast %18 : vector<8x256xf32> to vector<8x1x256xf32>
    %23 = vector.shape_cast %21 : vector<64x256xf32> to vector<8x8x256xf32>
    %24 = vector.broadcast %22 : vector<8x1x256xf32> to vector<8x8x256xf32>
    %25 = arith.addf %24, %23 : vector<8x8x256xf32>
    %c0_18 = arith.constant 0 : index
    %c0_19 = arith.constant 0 : index
    %26 = vector.load %arg8[%c0_18, %c0_19] : memref<1x256xf32, #tpu.memory_space<vmem>>, vector<1x256xf32>
    %27 = vector.shape_cast %26 : vector<1x256xf32> to vector<1x1x256xf32>
    %28 = vector.broadcast %27 : vector<1x1x256xf32> to vector<8x8x256xf32>
    %29 = arith.addf %25, %28 : vector<8x8x256xf32>
    %cst_20 = arith.constant 0.000000e+00 : f32
    %30 = vector.broadcast %cst_20 : f32 to vector<8x8x256xf32>
    %31 = arith.maximumf %29, %30 : vector<8x8x256xf32>
    %32 = vector.shape_cast %31 : vector<8x8x256xf32> to vector<64x256xf32>
    %33 = arith.truncf %32 : vector<64x256xf32> to vector<64x256xbf16>
    %c0_21 = arith.constant 0 : index
    %c0_22 = arith.constant 0 : index
    %34 = vector.load %arg9[%c0_21, %c0_22] : memref<256x128xbf16, #tpu.memory_space<vmem>>, vector<256x128xbf16>
    %cst_23 = arith.constant dense<0.000000e+00> : vector<64x128xf32>
    %35 = tpu.matmul %33, %34, %cst_23 {dimension_numbers = #tpu.dot_dimension_numbers<[1], [0], [0], [1], [0, 0, 1, 1], [], []>} : vector<64x256xbf16>, vector<256x128xbf16>, vector<64x128xf32> -> vector<64x128xf32>
    %c0_24 = arith.constant 0 : index
    %c0_25 = arith.constant 0 : index
    %36 = vector.load %arg10[%c0_24, %c0_25] : memref<1x128xf32, #tpu.memory_space<vmem>>, vector<1x128xf32>
    %37 = vector.broadcast %36 : vector<1x128xf32> to vector<64x128xf32>
    %38 = arith.addf %35, %37 : vector<64x128xf32>
    %39 = vector.shape_cast %38 : vector<64x128xf32> to vector<8x8x128xf32>
    %cst_26 = arith.constant dense<0xFF800000> : vector<8x128xf32>
    %40 = vector.multi_reduction <maximumf>, %39, %cst_26 [1] : vector<8x8x128xf32> to vector<8x128xf32>
    %c0_27 = arith.constant 0 : index
    %c0_28 = arith.constant 0 : index
    %41 = vector.load %arg11[%c0_27, %c0_28] : memref<8x128xf32, #tpu.memory_space<vmem>>, vector<8x128xf32>
    tpu.vector_store %arg11[%c0_27, %c0_28], %40 {strides = array<i32>} : memref<8x128xf32, #tpu.memory_space<vmem>>, vector<8x128xf32>,
    return
  }
  func.func @transform_0(%arg0: i32) -> (i32, i32) {
    %c0_i32 = arith.constant 0 : i32
    %c0_i32_0 = arith.constant 0 : i32
    return %arg0, %c0_i32 : i32, i32
  }
  func.func @transform_1(%arg0: i32) -> (i32, i32) {
    %c0_i32 = arith.constant 0 : i32
    %c0_i32_0 = arith.constant 0 : i32
    %c0_i32_1 = arith.constant 0 : i32
    return %c0_i32, %c0_i32_0 : i32, i32
  }
  func.func @transform_2(%arg0: i32) -> (i32, i32) {
    %c0_i32 = arith.constant 0 : i32
    %c0_i32_0 = arith.constant 0 : i32
    %c0_i32_1 = arith.constant 0 : i32
    return %c0_i32, %c0_i32_0 : i32, i32
  }
  func.func @transform_3(%arg0: i32) -> (i32, i32) {
    %c0_i32 = arith.constant 0 : i32
    %c0_i32_0 = arith.constant 0 : i32
    %c0_i32_1 = arith.constant 0 : i32
    return %c0_i32, %c0_i32_0 : i32, i32
  }
  func.func @transform_4(%arg0: i32) -> (i32, i32) {
    %c0_i32 = arith.constant 0 : i32
    %c0_i32_0 = arith.constant 0 : i32
    %c0_i32_1 = arith.constant 0 : i32
    return %c0_i32, %c0_i32_0 : i32, i32
  }
  func.func @transform_5(%arg0: i32) -> (i32, i32) {
    %c0_i32 = arith.constant 0 : i32
    %c0_i32_0 = arith.constant 0 : i32
    %c0_i32_1 = arith.constant 0 : i32
    return %c0_i32, %c0_i32_0 : i32, i32
  }
  func.func @transform_6(%arg0: i32) -> (i32, i32) {
    %c0_i32 = arith.constant 0 : i32
    %c0_i32_0 = arith.constant 0 : i32
    %c0_i32_1 = arith.constant 0 : i32
    return %c0_i32, %c0_i32_0 : i32, i32
  }
  func.func @transform_7(%arg0: i32) -> (i32, i32) {
    %c0_i32 = arith.constant 0 : i32
    %c0_i32_0 = arith.constant 0 : i32
    %c0_i32_1 = arith.constant 0 : i32
    return %c0_i32, %c0_i32_0 : i32, i32
  }
  func.func @transform_8(%arg0: i32) -> (i32, i32) {
    %c0_i32 = arith.constant 0 : i32
    %c0_i32_0 = arith.constant 0 : i32
    %c0_i32_1 = arith.constant 0 : i32
    return %c0_i32, %c0_i32_0 : i32, i32
  }
  func.func @transform_9(%arg0: i32) -> (i32, i32) {
    %c0_i32 = arith.constant 0 : i32
    %c0_i32_0 = arith.constant 0 : i32
    %c0_i32_1 = arith.constant 0 : i32
    return %c0_i32, %c0_i32_0 : i32, i32
  }
  func.func @transform_10(%arg0: i32) -> (i32, i32) {
    %c0_i32 = arith.constant 0 : i32
    %c0_i32_0 = arith.constant 0 : i32
    return %arg0, %c0_i32 : i32, i32
  }
}

</mosaic_0001>

<llo_original>
// kernel: tpu_custom_call.1
$region0: #{tpu_custom_call.1}
  #allocation0 [shape = 'u32[]', space=smem, size = 0x4, offset = 0x4, fixed_abs, tag = 'smem constant byte address 0x4 - core index']
  #allocation1 [shape = 'u32[144,128]{1,0:T(1,128)}', space=vmem, size = 0x12000, scoped, tag = 'internal scratch']
  %s0 = inlined_call_operand.vmem [shape: bf16[64,16], index: 0, kind: input, shape index: {}]
  %s1 = inlined_call_operand.vmem [shape: bf16[16,128], index: 1, kind: input, shape index: {}]
  %s2 = inlined_call_operand.vmem [shape: f32[1,128], index: 2, kind: input, shape index: {}]
  %s3 = inlined_call_operand.hbm [shape: bf16[128,256], index: 3, kind: input, shape index: {}]
  %s4 = inlined_call_operand.vmem [shape: f32[1,256], index: 4, kind: input, shape index: {}]
  %s5 = inlined_call_operand.hbm [shape: bf16[256,256], index: 5, kind: input, shape index: {}]
  %s6 = inlined_call_operand.hbm [shape: bf16[256,256], index: 6, kind: input, shape index: {}]
  %s7 = inlined_call_operand.vmem [shape: f32[1,256], index: 7, kind: input, shape index: {}]
  %s8 = inlined_call_operand.hbm [shape: bf16[256,128], index: 8, kind: input, shape index: {}]
  %s9 = inlined_call_operand.vmem [shape: f32[1,128], index: 9, kind: input, shape index: {}]
  %s10 = inlined_call_operand.hbm [shape: f32[8,128], index: 10, kind: output, shape index: {}]
  %s11 = sld [smem:[#allocation0]]
  $region66: #{tpu_custom_call.1} parent=0
    _
  %s13 = ssub.s32 1, %s11
  %s14 = scalar_select 0, %s13, %s11
  $region1: #{tpu_custom_call.1} parent=0
    #allocation2 [shape = 'u8[65536]{0}', space=vmem, size = 0x10000, scoped, tag = 'input window, operand 3, single buffered']
    #allocation3 [shape = 's32[1]{0}', space=sflag, size = 0x4, scoped, tag = 'scoped memory for tpu_custom_call.1']
    #allocation4 [shape = 's32[1]{0}', space=sflag, size = 0x4, scoped, tag = 'scoped memory for tpu_custom_call.1']
    #allocation5 [shape = 'u8[131072]{0}', space=vmem, size = 0x20000, scoped, tag = 'input window, operand 5, single buffered']
    #allocation6 [shape = 's32[1]{0}', space=sflag, size = 0x4, scoped, tag = 'scoped memory for tpu_custom_call.1']
    #allocation7 [shape = 'u8[131072]{0}', space=vmem, size = 0x20000, scoped, tag = 'input window, operand 6, single buffered']
    #allocation8 [shape = 'u8[65536]{0}', space=vmem, size = 0x10000, scoped, tag = 'input window, operand 8, single buffered']
    #allocation9 [shape = 's32[1]{0}', space=sflag, size = 0x4, scoped, tag = 'scoped memory for tpu_custom_call.1']
    #allocation10 [shape = 'u8[4096]{0}', space=vmem, size = 0x1000, scoped, tag = 'output window, operand 0, single buffered']
    %15 = vsyncpa [#allocation3], 0
    %16 = vsyncpa [#allocation6], 0
    %17 = vsyncpa [#allocation9], 0
    %18 = vsyncpa [#allocation4], 0
    // Predicated region
    $region2: #{tpu_custom_call.1} parent=1 // pred_check
      _
    $region3: #{tpu_custom_call.1} parent=1 // pred_check_branch
      %20 = sbr.rel (0) target = $region5
    $region4: #{tpu_custom_call.1} parent=1 // pred_region
      _
    $region5: #{tpu_custom_call.1} parent=1 // pred_fallthru
      _
    // Predicated region
    $region6: #{tpu_custom_call.1} parent=1 // pred_check
      _
    $region7: #{tpu_custom_call.1} parent=1 // pred_check_branch
      %22 = sbr.rel (0) target = $region9
    $region8: #{tpu_custom_call.1} parent=1 // pred_region
      _
    $region9: #{tpu_custom_call.1} parent=1 // pred_fallthru
      _
    // Predicated region
    $region10: #{tpu_custom_call.1} parent=1 // pred_check
      _
    $region11: #{tpu_custom_call.1} parent=1 // pred_check_branch
      %24 = sbr.rel (0) target = $region13
    $region12: #{tpu_custom_call.1} parent=1 // pred_region
      _
    $region13: #{tpu_custom_call.1} parent=1 // pred_fallthru
      _
    // Predicated region
    $region14: #{tpu_custom_call.1} parent=1 // pred_check
      _
    $region15: #{tpu_custom_call.1} parent=1 // pred_check_branch
      %26 = sbr.rel (0) target = $region17
    $region16: #{tpu_custom_call.1} parent=1 // pred_region
      %s28 = ssub.s32 2048, 2048
      %29 = vsyncadd [#allocation3], %s28
      %s30 = sshll.u32 [#allocation2], 4
      %s31 = int_to_ptr.vmem [resolvable:$true] %s30
      %36 = dma.hbm_to_vmem [thread:$0]  %s3, 2048, %s31, [#allocation3], 128, 128, 8
    $region17: #{tpu_custom_call.1} parent=1 // pred_fallthru
      _
    // Predicated region
    $region18: #{tpu_custom_call.1} parent=1 // pred_check
      _
    $region19: #{tpu_custom_call.1} parent=1 // pred_check_branch
      %38 = sbr.rel (0) target = $region21
    $region20: #{tpu_custom_call.1} parent=1 // pred_region
      _
    $region21: #{tpu_custom_call.1} parent=1 // pred_fallthru
      _
    // Predicated region
    $region22: #{tpu_custom_call.1} parent=1 // pred_check
      _
    $region23: #{tpu_custom_call.1} parent=1 // pred_check_branch
      %40 = sbr.rel (0) target = $region25
    $region24: #{tpu_custom_call.1} parent=1 // pred_region
      %s42 = ssub.s32 4096, 4096
      %43 = vsyncadd [#allocation6], %s42
      %s44 = sshll.u32 [#allocation5], 4
      %s45 = int_to_ptr.vmem [resolvable:$true] %s44
      %50 = dma.hbm_to_vmem [thread:$0]  %s5, 4096, %s45, [#allocation6], 128, 128, 8
    $region25: #{tpu_custom_call.1} parent=1 // pred_fallthru
      _
    // Predicated region
    $region26: #{tpu_custom_call.1} parent=1 // pred_check
      _
    $region27: #{tpu_custom_call.1} parent=1 // pred_check_branch
      %52 = sbr.rel (0) target = $region29
    $region28: #{tpu_custom_call.1} parent=1 // pred_region
      %s54 = ssub.s32 4096, 4096
      %55 = vsyncadd [#allocation6], %s54
      %s56 = sshll.u32 [#allocation7], 4
      %s57 = int_to_ptr.vmem [resolvable:$true] %s56
      %62 = dma.hbm_to_vmem [thread:$0]  %s6, 4096, %s57, [#allocation6], 128, 128, 8
    $region29: #{tpu_custom_call.1} parent=1 // pred_fallthru
      _
    // Predicated region
    $region30: #{tpu_custom_call.1} parent=1 // pred_check
      _
    $region31: #{tpu_custom_call.1} parent=1 // pred_check_branch
      %64 = sbr.rel (0) target = $region33
    $region32: #{tpu_custom_call.1} parent=1 // pred_region
      _
    $region33: #{tpu_custom_call.1} parent=1 // pred_fallthru
      _
    // Predicated region
    $region34: #{tpu_custom_call.1} parent=1 // pred_check
      _
    $region35: #{tpu_custom_call.1} parent=1 // pred_check_branch
      %66 = sbr.rel (0) target = $region37
    $region36: #{tpu_custom_call.1} parent=1 // pred_region
      %s68 = ssub.s32 2048, 2048
      %69 = vsyncadd [#allocation9], %s68
      %s70 = sshll.u32 [#allocation8], 4
      %s71 = int_to_ptr.vmem [resolvable:$true] %s70
      %76 = dma.hbm_to_vmem [thread:$0]  %s8, 2048, %s71, [#allocation9], 64, 64, 4
    $region37: #{tpu_custom_call.1} parent=1 // pred_fallthru
      _
    // Predicated region
    $region38: #{tpu_custom_call.1} parent=1 // pred_check
      _
    $region39: #{tpu_custom_call.1} parent=1 // pred_check_branch
      %78 = sbr.rel (0) target = $region41
    $region40: #{tpu_custom_call.1} parent=1 // pred_region
      _
    $region41: #{tpu_custom_call.1} parent=1 // pred_fallthru
      _
    // Predicated region
    $region42: #{tpu_custom_call.1} parent=1 // pred_check
      _
    $region43: #{tpu_custom_call.1} parent=1 // pred_check_branch
      %80 = sbr.rel (0) target = $region45
    $region44: #{tpu_custom_call.1} parent=1 // pred_region
      %81 = dma.done [#allocation3], 2048
    $region45: #{tpu_custom_call.1} parent=1 // pred_fallthru
      _
    // Predicated region
    $region46: #{tpu_custom_call.1} parent=1 // pred_check
      _
    $region47: #{tpu_custom_call.1} parent=1 // pred_check_branch
      %83 = sbr.rel (0) target = $region49
    $region48: #{tpu_custom_call.1} parent=1 // pred_region
      %84 = dma.done [#allocation6], 4096
    $region49: #{tpu_custom_call.1} parent=1 // pred_fallthru
      _
    // Predicated region
    $region50: #{tpu_custom_call.1} parent=1 // pred_check
      _
    $region51: #{tpu_custom_call.1} parent=1 // pred_check_branch
      %86 = sbr.rel (0) target = $region53
    $region52: #{tpu_custom_call.1} parent=1 // pred_region
      %87 = dma.done [#allocation6], 4096
    $region53: #{tpu_custom_call.1} parent=1 // pred_fallthru
      _
    // Predicated region
    $region54: #{tpu_custom_call.1} parent=1 // pred_check
      _
    $region55: #{tpu_custom_call.1} parent=1 // pred_check_branch
      %89 = sbr.rel (0) target = $region57
    $region56: #{tpu_custom_call.1} parent=1 // pred_region
      %90 = dma.done [#allocation9], 2048
    $region57: #{tpu_custom_call.1} parent=1 // pred_fallthru
      _
    %v92 = vld [vmem:[%s0] sm:$0xf]
    %v93 = vld [vmem:[%s0 + $0x4] sm:$0xf]
    %v94 = vld [vmem:[%s0 + $0x8] sm:$0xf]
    %v95 = vld [vmem:[%s0 + $0xc] sm:$0xf]
    %v96 = vld [vmem:[%s0 + $0x10] sm:$0xf]
    %v97 = vld [vmem:[%s0 + $0x14] sm:$0xf]
    %v98 = vld [vmem:[%s0 + $0x18] sm:$0xf]
    %v99 = vld [vmem:[%s0 + $0x1c] sm:$0xf]
    %v100 = vld [vmem:[%s1] sm:$0xf]
    %v101 = vld [vmem:[%s1 + $0x4] sm:$0xf]
    %v102 = vld [vmem:[%s2] sm:$0x1]
    %v104 = vlaneseq
    %v105 = vshrl.u32 %v104, 7
    %v106 = vsub.s32 0, %v105
    %v107 = vrot.slane %v102, %v106
    %v117 = vunpack.c.l.b16 %v92
    %v118 = vunpack.c.l.b16 %v93
    %v119 = vunpack.c.l.b16 %v94
    %v120 = vunpack.c.l.b16 %v95
    %v121 = vunpack.c.l.b16 %v96
    %v122 = vunpack.c.l.b16 %v97
    %v123 = vunpack.c.l.b16 %v98
    %v124 = vunpack.c.l.b16 %v99
    %v125 = vpack.c.b16 %v118, %v117
    %v126 = vpack.c.b16 %v120, %v119
    %v127 = vpack.c.b16 %v122, %v121
    %v128 = vpack.c.b16 %v124, %v123
    %v131 = vunpack.c.l.b16 %v100
    %v132 = vunpack.c.l.b16 %v101
    %v133 = vpack.c.b16 %v132, %v131
    %vm135 = vcmask 130048
    %v137 = vsel %vm135, %v125, 0
    %v140 = vsel %vm135, %v126, 0
    %v143 = vsel %vm135, %v127, 0
    %v146 = vsel %vm135, %v128, 0
    %148 = vmatprep.subr.bf16.mxu0 0
    %149 = vmatpush1.bf16.msra.mxu0 0
    %150 = vmatprep.subr.bf16.mxu0 0
    %151 = vmatpush1.bf16.msra.mxu0 0
    %152 = vmatprep.subr.bf16.mxu0 0
    %153 = vmatpush1.bf16.msra.mxu0 0
    %154 = vmatprep.subr.bf16.mxu0 0
    %155 = vmatpush1.bf16.msra.mxu0 0
    %156 = vmatprep.subr.bf16.mxu0 0
    %157 = vmatpush1.bf16.msra.mxu0 0
    %158 = vmatprep.subr.bf16.mxu0 0
    %159 = vmatpush1.bf16.msra.mxu0 0
    %160 = vmatprep.subr.bf16.mxu0 0
    %161 = vmatpush1.bf16.msra.mxu0 0
    %162 = vmatprep.subr.bf16.mxu0 0
    %163 = vmatpush1.bf16.msra.mxu0 %v133
    %164 = vmatprep.subr.bf16.mxu0 0
    %165 = vmatpush2.bf16.msra.mxu0 0
    %166 = vmatprep.subr.bf16.mxu0 0
    %167 = vmatpush2.bf16.msra.mxu0 0
    %168 = vmatprep.subr.bf16.mxu0 0
    %169 = vmatpush2.bf16.msra.mxu0 0
    %170 = vmatprep.subr.bf16.mxu0 0
    %171 = vmatpush2.bf16.msra.mxu0 0
    %172 = vmatprep.subr.bf16.mxu0 0
    %173 = vmatpush2.bf16.msra.mxu0 0
    %174 = vmatprep.subr.bf16.mxu0 0
    %175 = vmatpush2.bf16.msra.mxu0 0
    %176 = vmatprep.subr.bf16.mxu0 0
    %177 = vmatpush2.bf16.msra.mxu0 0
    %178 = vmatprep.subr.bf16.mxu0 0
    %179 = vmatpush2.bf16.msra.mxu0 0
    %180 = vmatprep.mubr.bf16.mxu0 0
    %181 = vmatmul.mubr.bf16.gmra.mxu0 %v137
    %v182 = vpop.f32.mrf.mxu0
    %v183 = vadd.f32 %v107, %v182
    %v184 = vpop.f32.mrf.mxu0
    %v185 = vpop.f32.mrf.mxu0
    %v186 = vadd.f32 %v107, %v185
    %v187 = vpop.f32.mrf.mxu0
    %188 = vmatprep.mubr.bf16.mxu0 0
    %189 = vmatmul.mubr.bf16.gmra.mxu0 %v140
    %v190 = vpop.f32.mrf.mxu0
    %v191 = vadd.f32 %v107, %v190
    %v192 = vpop.f32.mrf.mxu0
    %v193 = vpop.f32.mrf.mxu0
    %v194 = vadd.f32 %v107, %v193
    %v195 = vpop.f32.mrf.mxu0
    %196 = vmatprep.mubr.bf16.mxu0 0
    %197 = vmatmul.mubr.bf16.gmra.mxu0 %v143
    %v198 = vpop.f32.mrf.mxu0
    %v199 = vadd.f32 %v107, %v198
    %v200 = vpop.f32.mrf.mxu0
    %v201 = vpop.f32.mrf.mxu0
    %v202 = vadd.f32 %v107, %v201
    %v203 = vpop.f32.mrf.mxu0
    %204 = vmatprep.mubr.bf16.mxu0 0
    %205 = vmatmul.mubr.bf16.gmra.mxu0 %v146
    %v206 = vpop.f32.mrf.mxu0
    %v207 = vadd.f32 %v107, %v206
    %v208 = vpop.f32.mrf.mxu0
    %v209 = vpop.f32.mrf.mxu0
    %v210 = vadd.f32 %v107, %v209
    %v211 = vpop.f32.mrf.mxu0
    %212 = vdwg.mxu0
    %v213 = vmax.f32 %v183, 0.0
    %v214 = vmax.f32 %v186, 0.0
    %v215 = vmax.f32 %v191, 0.0
    %v216 = vmax.f32 %v194, 0.0
    %v217 = vmax.f32 %v199, 0.0
    %v218 = vmax.f32 %v202, 0.0
    %v219 = vmax.f32 %v207, 0.0
    %v220 = vmax.f32 %v210, 0.0
    %v221 = vpack.c.bf16 %v214, %v213
    %v222 = vpack.c.bf16 %v216, %v215
    %v223 = vpack.c.bf16 %v218, %v217
    %v224 = vpack.c.bf16 %v220, %v219
    %v225 = vld [vmem:[#allocation2] sm:$0xff]
    %v226 = vld [vmem:[#allocation2 + $0x8] sm:$0xff]
    %v227 = vld [vmem:[#allocation2 + $0x10] sm:$0xff]
    %v228 = vld [vmem:[#allocation2 + $0x18] sm:$0xff]
    %v229 = vld [vmem:[#allocation2 + $0x20] sm:$0xff]
    %v230 = vld [vmem:[#allocation2 + $0x28] sm:$0xff]
    %v231 = vld [vmem:[#allocation2 + $0x30] sm:$0xff]
    %v232 = vld [vmem:[#allocation2 + $0x38] sm:$0xff]
    %v233 = vld [vmem:[#allocation2 + $0x40] sm:$0xff]
    %v234 = vld [vmem:[#allocation2 + $0x48] sm:$0xff]
    %v235 = vld [vmem:[#allocation2 + $0x50] sm:$0xff]
    %v236 = vld [vmem:[#allocation2 + $0x58] sm:$0xff]
    %v237 = vld [vmem:[#allocation2 + $0x60] sm:$0xff]
    %v238 = vld [vmem:[#allocation2 + $0x68] sm:$0xff]
    %v239 = vld [vmem:[#allocation2 + $0x70] sm:$0xff]
    %v240 = vld [vmem:[#allocation2 + $0x78] sm:$0xff]
    %v241 = vld [vmem:[%s4] sm:$0x3]
    %v243 = vlaneseq
    %v244 = vshrl.u32 %v243, 7
    %v245 = vsub.s32 0, %v244
    %v246 = vrot.slane %v241, %v245
    %v247 = vlaneseq
    %v248 = vshrl.u32 %v247, 7
    %v249 = vsub.s32 1, %v248
    %v250 = vrot.slane %v241, %v249
    %v269 = vunpack.c.l.b16 %v225
    %v270 = vunpack.c.h.b16 %v225
    %v271 = vunpack.c.l.b16 %v226
    %v272 = vunpack.c.h.b16 %v226
    %v273 = vunpack.c.l.b16 %v227
    %v274 = vunpack.c.h.b16 %v227
    %v275 = vunpack.c.l.b16 %v228
    %v276 = vunpack.c.h.b16 %v228
    %v277 = vunpack.c.l.b16 %v229
    %v278 = vunpack.c.h.b16 %v229
    %v279 = vunpack.c.l.b16 %v230
    %v280 = vunpack.c.h.b16 %v230
    %v281 = vunpack.c.l.b16 %v231
    %v282 = vunpack.c.h.b16 %v231
    %v283 = vunpack.c.l.b16 %v232
    %v284 = vunpack.c.h.b16 %v232
    %v285 = vunpack.c.l.b16 %v233
    %v286 = vunpack.c.h.b16 %v233
    %v287 = vunpack.c.l.b16 %v234
    %v288 = vunpack.c.h.b16 %v234
    %v289 = vunpack.c.l.b16 %v235
    %v290 = vunpack.c.h.b16 %v235
    %v291 = vunpack.c.l.b16 %v236
    %v292 = vunpack.c.h.b16 %v236
    %v293 = vunpack.c.l.b16 %v237
    %v294 = vunpack.c.h.b16 %v237
    %v295 = vunpack.c.l.b16 %v238
    %v296 = vunpack.c.h.b16 %v238
    %v297 = vunpack.c.l.b16 %v239
    %v298 = vunpack.c.h.b16 %v239
    %v299 = vunpack.c.l.b16 %v240
    %v300 = vunpack.c.h.b16 %v240
    %v301 = vpack.c.b16 %v271, %v269
    %v302 = vpack.c.b16 %v272, %v270
    %v303 = vpack.c.b16 %v275, %v273
    %v304 = vpack.c.b16 %v276, %v274
    %v305 = vpack.c.b16 %v279, %v277
    %v306 = vpack.c.b16 %v280, %v278
    %v307 = vpack.c.b16 %v283, %v281
    %v308 = vpack.c.b16 %v284, %v282
    %v309 = vpack.c.b16 %v287, %v285
    %v310 = vpack.c.b16 %v288, %v286
    %v311 = vpack.c.b16 %v291, %v289
    %v312 = vpack.c.b16 %v292, %v290
    %v313 = vpack.c.b16 %v295, %v293
    %v314 = vpack.c.b16 %v296, %v294
    %v315 = vpack.c.b16 %v299, %v297
    %v316 = vpack.c.b16 %v300, %v298
    %333 = vmatprep.subr.bf16.mxu0 %v316
    %334 = vmatpush1.bf16.msra.mxu0 %v315
    %335 = vmatprep.subr.bf16.mxu0 %v314
    %336 = vmatpush1.bf16.msra.mxu0 %v313
    %337 = vmatprep.subr.bf16.mxu0 %v312
    %338 = vmatpush1.bf16.msra.mxu0 %v311
    %339 = vmatprep.subr.bf16.mxu0 %v310
    %340 = vmatpush1.bf16.msra.mxu0 %v309
    %341 = vmatprep.subr.bf16.mxu0 %v308
    %342 = vmatpush1.bf16.msra.mxu0 %v307
    %343 = vmatprep.subr.bf16.mxu0 %v306
    %344 = vmatpush1.bf16.msra.mxu0 %v305
    %345 = vmatprep.subr.bf16.mxu0 %v304
    %346 = vmatpush1.bf16.msra.mxu0 %v303
    %347 = vmatprep.subr.bf16.mxu0 %v302
    %348 = vmatpush1.bf16.msra.mxu0 %v301
    %349 = vmatprep.subr.bf16.mxu0 0
    %350 = vmatpush2.bf16.msra.mxu0 0
    %351 = vmatprep.subr.bf16.mxu0 0
    %352 = vmatpush2.bf16.msra.mxu0 0
    %353 = vmatprep.subr.bf16.mxu0 0
    %354 = vmatpush2.bf16.msra.mxu0 0
    %355 = vmatprep.subr.bf16.mxu0 0
    %356 = vmatpush2.bf16.msra.mxu0 0
    %357 = vmatprep.subr.bf16.mxu0 0
    %358 = vmatpush2.bf16.msra.mxu0 0
    %359 = vmatprep.subr.bf16.mxu0 0
    %360 = vmatpush2.bf16.msra.mxu0 0
    %361 = vmatprep.subr.bf16.mxu0 0
    %362 = vmatpush2.bf16.msra.mxu0 0
    %363 = vmatprep.subr.bf16.mxu0 0
    %364 = vmatpush2.bf16.msra.mxu0 0
    %365 = vmatprep.mubr.bf16.mxu0 0
    %366 = vmatmul.mubr.bf16.gmra.mxu0 %v221
    %v367 = vpop.f32.mrf.mxu0
    %v368 = vadd.f32 %v246, %v367
    %v369 = vpop.f32.mrf.mxu0
    %v370 = vadd.f32 %v250, %v369
    %v371 = vpop.f32.mrf.mxu0
    %v372 = vadd.f32 %v246, %v371
    %v373 = vpop.f32.mrf.mxu0
    %v374 = vadd.f32 %v250, %v373
    %375 = vmatprep.mubr.bf16.mxu0 0
    %376 = vmatmul.mubr.bf16.gmra.mxu0 %v222
    %v377 = vpop.f32.mrf.mxu0
    %v378 = vadd.f32 %v246, %v377
    %v379 = vpop.f32.mrf.mxu0
    %v380 = vadd.f32 %v250, %v379
    %v381 = vpop.f32.mrf.mxu0
    %v382 = vadd.f32 %v246, %v381
    %v383 = vpop.f32.mrf.mxu0
    %v384 = vadd.f32 %v250, %v383
    %385 = vmatprep.mubr.bf16.mxu0 0
    %386 = vmatmul.mubr.bf16.gmra.mxu0 %v223
    %v387 = vpop.f32.mrf.mxu0
    %v388 = vadd.f32 %v246, %v387
    %v389 = vpop.f32.mrf.mxu0
    %v390 = vadd.f32 %v250, %v389
    %v391 = vpop.f32.mrf.mxu0
    %v392 = vadd.f32 %v246, %v391
    %v393 = vpop.f32.mrf.mxu0
    %v394 = vadd.f32 %v250, %v393
    %395 = vmatprep.mubr.bf16.mxu0 0
    %396 = vmatmul.mubr.bf16.gmra.mxu0 %v224
    %v397 = vpop.f32.mrf.mxu0
    %v398 = vadd.f32 %v246, %v397
    %v399 = vpop.f32.mrf.mxu0
    %v400 = vadd.f32 %v250, %v399
    %v401 = vpop.f32.mrf.mxu0
    %v402 = vadd.f32 %v246, %v401
    %v403 = vpop.f32.mrf.mxu0
    %v404 = vadd.f32 %v250, %v403
    %405 = vdwg.mxu0
    %v406 = vrot.slane %v368, 4
    %v407 = vmax.f32 %v368, %v406
    %v408 = vrot.slane %v407, 2
    %v409 = vmax.f32 %v407, %v408
    %v410 = vrot.slane %v409, 1
    %v411 = vmax.f32 %v409, %v410
    %v412 = vrot.slane %v370, 4
    %v413 = vmax.f32 %v370, %v412
    %v414 = vrot.slane %v413, 2
    %v415 = vmax.f32 %v413, %v414
    %v416 = vrot.slane %v415, 1
    %v417 = vmax.f32 %v415, %v416
    %v418 = vrot.slane %v372, 4
    %v419 = vmax.f32 %v372, %v418
    %v420 = vrot.slane %v419, 2
    %v421 = vmax.f32 %v419, %v420
    %v422 = vrot.slane %v421, 1
    %v423 = vmax.f32 %v421, %v422
    %v424 = vrot.slane %v374, 4
    %v425 = vmax.f32 %v374, %v424
    %v426 = vrot.slane %v425, 2
    %v427 = vmax.f32 %v425, %v426
    %v428 = vrot.slane %v427, 1
    %v429 = vmax.f32 %v427, %v428
    %v430 = vrot.slane %v378, 4
    %v431 = vmax.f32 %v378, %v430
    %v432 = vrot.slane %v431, 2
    %v433 = vmax.f32 %v431, %v432
    %v434 = vrot.slane %v433, 1
    %v435 = vmax.f32 %v433, %v434
    %v436 = vrot.slane %v380, 4
    %v437 = vmax.f32 %v380, %v436
    %v438 = vrot.slane %v437, 2
    %v439 = vmax.f32 %v437, %v438
    %v440 = vrot.slane %v439, 1
    %v441 = vmax.f32 %v439, %v440
    %v442 = vrot.slane %v382, 4
    %v443 = vmax.f32 %v382, %v442
    %v444 = vrot.slane %v443, 2
    %v445 = vmax.f32 %v443, %v444
    %v446 = vrot.slane %v445, 1
    %v447 = vmax.f32 %v445, %v446
    %v448 = vrot.slane %v384, 4
    %v449 = vmax.f32 %v384, %v448
    %v450 = vrot.slane %v449, 2
    %v451 = vmax.f32 %v449, %v450
    %v452 = vrot.slane %v451, 1
    %v453 = vmax.f32 %v451, %v452
    %v454 = vrot.slane %v388, 4
    %v455 = vmax.f32 %v388, %v454
    %v456 = vrot.slane %v455, 2
    %v457 = vmax.f32 %v455, %v456
    %v458 = vrot.slane %v457, 1
    %v459 = vmax.f32 %v457, %v458
    %v460 = vrot.slane %v390, 4
    %v461 = vmax.f32 %v390, %v460
    %v462 = vrot.slane %v461, 2
    %v463 = vmax.f32 %v461, %v462
    %v464 = vrot.slane %v463, 1
    %v465 = vmax.f32 %v463, %v464
    %v466 = vrot.slane %v392, 4
    %v467 = vmax.f32 %v392, %v466
    %v468 = vrot.slane %v467, 2
    %v469 = vmax.f32 %v467, %v468
    %v470 = vrot.slane %v469, 1
    %v471 = vmax.f32 %v469, %v470
    %v472 = vrot.slane %v394, 4
    %v473 = vmax.f32 %v394, %v472
    %v474 = vrot.slane %v473, 2
    %v475 = vmax.f32 %v473, %v474
    %v476 = vrot.slane %v475, 1
    %v477 = vmax.f32 %v475, %v476
    %v478 = vrot.slane %v398, 4
    %v479 = vmax.f32 %v398, %v478
    %v480 = vrot.slane %v479, 2
    %v481 = vmax.f32 %v479, %v480
    %v482 = vrot.slane %v481, 1
    %v483 = vmax.f32 %v481, %v482
    %v484 = vrot.slane %v400, 4
    %v485 = vmax.f32 %v400, %v484
    %v486 = vrot.slane %v485, 2
    %v487 = vmax.f32 %v485, %v486
    %v488 = vrot.slane %v487, 1
    %v489 = vmax.f32 %v487, %v488
    %v490 = vrot.slane %v402, 4
    %v491 = vmax.f32 %v402, %v490
    %v492 = vrot.slane %v491, 2
    %v493 = vmax.f32 %v491, %v492
    %v494 = vrot.slane %v493, 1
    %v495 = vmax.f32 %v493, %v494
    %v496 = vrot.slane %v404, 4
    %v497 = vmax.f32 %v404, %v496
    %v498 = vrot.slane %v497, 2
    %v499 = vmax.f32 %v497, %v498
    %v500 = vrot.slane %v499, 1
    %v501 = vmax.f32 %v499, %v500
    %v502 = vpack.c.bf16 %v411, %v411
    %v503 = vpack.c.bf16 %v417, %v417
    %v504 = vpack.c.bf16 %v423, %v423
    %v505 = vpack.c.bf16 %v429, %v429
    %v506 = vpack.c.bf16 %v435, %v435
    %v507 = vpack.c.bf16 %v441, %v441
    %v508 = vpack.c.bf16 %v447, %v447
    %v509 = vpack.c.bf16 %v453, %v453
    %v510 = vpack.c.bf16 %v459, %v459
    %v511 = vpack.c.bf16 %v465, %v465
    %v512 = vpack.c.bf16 %v471, %v471
    %v513 = vpack.c.bf16 %v477, %v477
    %v514 = vpack.c.bf16 %v483, %v483
    %v515 = vpack.c.bf16 %v489, %v489
    %v516 = vpack.c.bf16 %v495, %v495
    %v517 = vpack.c.bf16 %v501, %v501
    %v518 = vld [vmem:[#allocation5] sm:$0xff]
    %v519 = vld [vmem:[#allocation5 + $0x8] sm:$0xff]
    %v520 = vld [vmem:[#allocation5 + $0x10] sm:$0xff]
    %v521 = vld [vmem:[#allocation5 + $0x18] sm:$0xff]
    %v522 = vld [vmem:[#allocation5 + $0x20] sm:$0xff]
    %v523 = vld [vmem:[#allocation5 + $0x28] sm:$0xff]
    %v524 = vld [vmem:[#allocation5 + $0x30] sm:$0xff]
    %v525 = vld [vmem:[#allocation5 + $0x38] sm:$0xff]
    %v526 = vld [vmem:[#allocation5 + $0x40] sm:$0xff]
    %v527 = vld [vmem:[#allocation5 + $0x48] sm:$0xff]
    %v528 = vld [vmem:[#allocation5 + $0x50] sm:$0xff]
    %v529 = vld [vmem:[#allocation5 + $0x58] sm:$0xff]
    %v530 = vld [vmem:[#allocation5 + $0x60] sm:$0xff]
    %v531 = vld [vmem:[#allocation5 + $0x68] sm:$0xff]
    %v532 = vld [vmem:[#allocation5 + $0x70] sm:$0xff]
    %v533 = vld [vmem:[#allocation5 + $0x78] sm:$0xff]
    %v534 = vld [vmem:[#allocation5 + $0x80] sm:$0xff]
    %v535 = vld [vmem:[#allocation5 + $0x88] sm:$0xff]
    %v536 = vld [vmem:[#allocation5 + $0x90] sm:$0xff]
    %v537 = vld [vmem:[#allocation5 + $0x98] sm:$0xff]
    %v538 = vld [vmem:[#allocation5 + $0xa0] sm:$0xff]
    %v539 = vld [vmem:[#allocation5 + $0xa8] sm:$0xff]
    %v540 = vld [vmem:[#allocation5 + $0xb0] sm:$0xff]
    %v541 = vld [vmem:[#allocation5 + $0xb8] sm:$0xff]
    %v542 = vld [vmem:[#allocation5 + $0xc0] sm:$0xff]
    %v543 = vld [vmem:[#allocation5 + $0xc8] sm:$0xff]
    %v544 = vld [vmem:[#allocation5 + $0xd0] sm:$0xff]
    %v545 = vld [vmem:[#allocation5 + $0xd8] sm:$0xff]
    %v546 = vld [vmem:[#allocation5 + $0xe0] sm:$0xff]
    %v547 = vld [vmem:[#allocation5 + $0xe8] sm:$0xff]
    %v548 = vld [vmem:[#allocation5 + $0xf0] sm:$0xff]
    %v549 = vld [vmem:[#allocation5 + $0xf8] sm:$0xff]
    %v566 = vunpack.c.l.b16 %v502
    %v567 = vunpack.c.l.b16 %v503
    %v568 = vunpack.c.l.b16 %v504
    %v569 = vunpack.c.l.b16 %v505
    %v570 = vunpack.c.l.b16 %v506
    %v571 = vunpack.c.l.b16 %v507
    %v572 = vunpack.c.l.b16 %v508
    %v573 = vunpack.c.l.b16 %v509
    %v574 = vunpack.c.l.b16 %v510
    %v575 = vunpack.c.l.b16 %v511
    %v576 = vunpack.c.l.b16 %v512
    %v577 = vunpack.c.l.b16 %v513
    %v578 = vunpack.c.l.b16 %v514
    %v579 = vunpack.c.l.b16 %v515
    %v580 = vunpack.c.l.b16 %v516
    %v581 = vunpack.c.l.b16 %v517
    %vm582 = vcmask 1041409
    %v583 = vsel %vm582, %v568, %v566
    %vm584 = vcmask 1042434
    %v585 = vsel %vm584, %v570, %v583
    %vm586 = vcmask 1043459
    %v587 = vsel %vm586, %v572, %v585
    %vm588 = vcmask 1044484
    %v589 = vsel %vm588, %v574, %v587
    %vm590 = vcmask 1045509
    %v591 = vsel %vm590, %v576, %v589
    %vm592 = vcmask 1046534
    %v593 = vsel %vm592, %v578, %v591
    %vm594 = vcmask 1047559
    %v595 = vsel %vm594, %v580, %v593
    %v596 = vsel %vm582, %v569, %v567
    %v597 = vsel %vm584, %v571, %v596
    %v598 = vsel %vm586, %v573, %v597
    %v599 = vsel %vm588, %v575, %v598
    %v600 = vsel %vm590, %v577, %v599
    %v601 = vsel %vm592, %v579, %v600
    %v602 = vsel %vm594, %v581, %v601
    %v603 = vpack.c.b16 %v595, %v595
    %v604 = vpack.c.b16 %v602, %v602
    %v639 = vunpack.c.l.b16 %v518
    %v640 = vunpack.c.h.b16 %v518
    %v641 = vunpack.c.l.b16 %v519
    %v642 = vunpack.c.h.b16 %v519
    %v643 = vunpack.c.l.b16 %v520
    %v644 = vunpack.c.h.b16 %v520
    %v645 = vunpack.c.l.b16 %v521
    %v646 = vunpack.c.h.b16 %v521
    %v647 = vunpack.c.l.b16 %v522
    %v648 = vunpack.c.h.b16 %v522
    %v649 = vunpack.c.l.b16 %v523
    %v650 = vunpack.c.h.b16 %v523
    %v651 = vunpack.c.l.b16 %v524
    %v652 = vunpack.c.h.b16 %v524
    %v653 = vunpack.c.l.b16 %v525
    %v654 = vunpack.c.h.b16 %v525
    %v655 = vunpack.c.l.b16 %v526
    %v656 = vunpack.c.h.b16 %v526
    %v657 = vunpack.c.l.b16 %v527
    %v658 = vunpack.c.h.b16 %v527
    %v659 = vunpack.c.l.b16 %v528
    %v660 = vunpack.c.h.b16 %v528
    %v661 = vunpack.c.l.b16 %v529
    %v662 = vunpack.c.h.b16 %v529
    %v663 = vunpack.c.l.b16 %v530
    %v664 = vunpack.c.h.b16 %v530
    %v665 = vunpack.c.l.b16 %v531
    %v666 = vunpack.c.h.b16 %v531
    %v667 = vunpack.c.l.b16 %v532
    %v668 = vunpack.c.h.b16 %v532
    %v669 = vunpack.c.l.b16 %v533
    %v670 = vunpack.c.h.b16 %v533
    %v671 = vunpack.c.l.b16 %v534
    %v672 = vunpack.c.h.b16 %v534
    %v673 = vunpack.c.l.b16 %v535
    %v674 = vunpack.c.h.b16 %v535
    %v675 = vunpack.c.l.b16 %v536
    %v676 = vunpack.c.h.b16 %v536
    %v677 = vunpack.c.l.b16 %v537
    %v678 = vunpack.c.h.b16 %v537
    %v679 = vunpack.c.l.b16 %v538
    %v680 = vunpack.c.h.b16 %v538
    %v681 = vunpack.c.l.b16 %v539
    %v682 = vunpack.c.h.b16 %v539
    %v683 = vunpack.c.l.b16 %v540
    %v684 = vunpack.c.h.b16 %v540
    %v685 = vunpack.c.l.b16 %v541
    %v686 = vunpack.c.h.b16 %v541
    %v687 = vunpack.c.l.b16 %v542
    %v688 = vunpack.c.h.b16 %v542
    %v689 = vunpack.c.l.b16 %v543
    %v690 = vunpack.c.h.b16 %v543
    %v691 = vunpack.c.l.b16 %v544
    %v692 = vunpack.c.h.b16 %v544
    %v693 = vunpack.c.l.b16 %v545
    %v694 = vunpack.c.h.b16 %v545
    %v695 = vunpack.c.l.b16 %v546
    %v696 = vunpack.c.h.b16 %v546
    %v697 = vunpack.c.l.b16 %v547
    %v698 = vunpack.c.h.b16 %v547
    %v699 = vunpack.c.l.b16 %v548
    %v700 = vunpack.c.h.b16 %v548
    %v701 = vunpack.c.l.b16 %v549
    %v702 = vunpack.c.h.b16 %v549
    %v703 = vpack.c.b16 %v641, %v639
    %v704 = vpack.c.b16 %v642, %v640
    %v705 = vpack.c.b16 %v645, %v643
    %v706 = vpack.c.b16 %v646, %v644
    %v707 = vpack.c.b16 %v649, %v647
    %v708 = vpack.c.b16 %v650, %v648
    %v709 = vpack.c.b16 %v653, %v651
    %v710 = vpack.c.b16 %v654, %v652
    %v711 = vpack.c.b16 %v657, %v655
    %v712 = vpack.c.b16 %v658, %v656
    %v713 = vpack.c.b16 %v661, %v659
    %v714 = vpack.c.b16 %v662, %v660
    %v715 = vpack.c.b16 %v665, %v663
    %v716 = vpack.c.b16 %v666, %v664
    %v717 = vpack.c.b16 %v669, %v667
    %v718 = vpack.c.b16 %v670, %v668
    %v719 = vpack.c.b16 %v673, %v671
    %v720 = vpack.c.b16 %v674, %v672
    %v721 = vpack.c.b16 %v677, %v675
    %v722 = vpack.c.b16 %v678, %v676
    %v723 = vpack.c.b16 %v681, %v679
    %v724 = vpack.c.b16 %v682, %v680
    %v725 = vpack.c.b16 %v685, %v683
    %v726 = vpack.c.b16 %v686, %v684
    %v727 = vpack.c.b16 %v689, %v687
    %v728 = vpack.c.b16 %v690, %v688
    %v729 = vpack.c.b16 %v693, %v691
    %v730 = vpack.c.b16 %v694, %v692
    %v731 = vpack.c.b16 %v697, %v695
    %v732 = vpack.c.b16 %v698, %v696
    %v733 = vpack.c.b16 %v701, %v699
    %v734 = vpack.c.b16 %v702, %v700
    %767 = vmatprep.subr.bf16.mxu0 %v718
    %768 = vmatpush1.bf16.msra.mxu0 %v717
    %769 = vmatprep.subr.bf16.mxu0 %v716
    %770 = vmatpush1.bf16.msra.mxu0 %v715
    %771 = vmatprep.subr.bf16.mxu0 %v714
    %772 = vmatpush1.bf16.msra.mxu0 %v713
    %773 = vmatprep.subr.bf16.mxu0 %v712
    %774 = vmatpush1.bf16.msra.mxu0 %v711
    %775 = vmatprep.subr.bf16.mxu0 %v710
    %776 = vmatpush1.bf16.msra.mxu0 %v709
    %777 = vmatprep.subr.bf16.mxu0 %v708
    %778 = vmatpush1.bf16.msra.mxu0 %v707
    %779 = vmatprep.subr.bf16.mxu0 %v706
    %780 = vmatpush1.bf16.msra.mxu0 %v705
    %781 = vmatprep.subr.bf16.mxu0 %v704
    %782 = vmatpush1.bf16.msra.mxu0 %v703
    %783 = vmatprep.subr.bf16.mxu0 %v734
    %784 = vmatpush2.bf16.msra.mxu0 %v733
    %785 = vmatprep.subr.bf16.mxu0 %v732
    %786 = vmatpush2.bf16.msra.mxu0 %v731
    %787 = vmatprep.subr.bf16.mxu0 %v730
    %788 = vmatpush2.bf16.msra.mxu0 %v729
    %789 = vmatprep.subr.bf16.mxu0 %v728
    %790 = vmatpush2.bf16.msra.mxu0 %v727
    %791 = vmatprep.subr.bf16.mxu0 %v726
    %792 = vmatpush2.bf16.msra.mxu0 %v725
    %793 = vmatprep.subr.bf16.mxu0 %v724
    %794 = vmatpush2.bf16.msra.mxu0 %v723
    %795 = vmatprep.subr.bf16.mxu0 %v722
    %796 = vmatpush2.bf16.msra.mxu0 %v721
    %797 = vmatprep.subr.bf16.mxu0 %v720
    %798 = vmatpush2.bf16.msra.mxu0 %v719
    %799 = vmatprep.mubr.bf16.mxu0 %v604
    %800 = vmatmul.mubr.bf16.gmra.mxu0 %v603
    %v801 = vpop.f32.mrf.mxu0
    %v802 = vadd.f32 0.0, %v801
    %v803 = vpop.f32.mrf.mxu0
    %v804 = vadd.f32 0.0, %v803
    %v805 = vpop.f32.mrf.mxu0
    %v806 = vpop.f32.mrf.mxu0
    %807 = vdwg.mxu0
    %v808 = vpack.c.bf16 %v372, %v368
    %v809 = vpack.c.bf16 %v374, %v370
    %v810 = vpack.c.bf16 %v382, %v378
    %v811 = vpack.c.bf16 %v384, %v380
    %v812 = vpack.c.bf16 %v392, %v388
    %v813 = vpack.c.bf16 %v394, %v390
    %v814 = vpack.c.bf16 %v402, %v398
    %v815 = vpack.c.bf16 %v404, %v400
    %v816 = vld [vmem:[#allocation7] sm:$0xff]
    %v817 = vld [vmem:[#allocation7 + $0x8] sm:$0xff]
    %v818 = vld [vmem:[#allocation7 + $0x10] sm:$0xff]
    %v819 = vld [vmem:[#allocation7 + $0x18] sm:$0xff]
    %v820 = vld [vmem:[#allocation7 + $0x20] sm:$0xff]
    %v821 = vld [vmem:[#allocation7 + $0x28] sm:$0xff]
    %v822 = vld [vmem:[#allocation7 + $0x30] sm:$0xff]
    %v823 = vld [vmem:[#allocation7 + $0x38] sm:$0xff]
    %v824 = vld [vmem:[#allocation7 + $0x40] sm:$0xff]
    %v825 = vld [vmem:[#allocation7 + $0x48] sm:$0xff]
    %v826 = vld [vmem:[#allocation7 + $0x50] sm:$0xff]
    %v827 = vld [vmem:[#allocation7 + $0x58] sm:$0xff]
    %v828 = vld [vmem:[#allocation7 + $0x60] sm:$0xff]
    %v829 = vld [vmem:[#allocation7 + $0x68] sm:$0xff]
    %v830 = vld [vmem:[#allocation7 + $0x70] sm:$0xff]
    %v831 = vld [vmem:[#allocation7 + $0x78] sm:$0xff]
    %v832 = vld [vmem:[#allocation7 + $0x80] sm:$0xff]
    %v833 = vld [vmem:[#allocation7 + $0x88] sm:$0xff]
    %v834 = vld [vmem:[#allocation7 + $0x90] sm:$0xff]
    %v835 = vld [vmem:[#allocation7 + $0x98] sm:$0xff]
    %v836 = vld [vmem:[#allocation7 + $0xa0] sm:$0xff]
    %v837 = vld [vmem:[#allocation7 + $0xa8] sm:$0xff]
    %v838 = vld [vmem:[#allocation7 + $0xb0] sm:$0xff]
    %v839 = vld [vmem:[#allocation7 + $0xb8] sm:$0xff]
    %v840 = vld [vmem:[#allocation7 + $0xc0] sm:$0xff]
    %v841 = vld [vmem:[#allocation7 + $0xc8] sm:$0xff]
    %v842 = vld [vmem:[#allocation7 + $0xd0] sm:$0xff]
    %v843 = vld [vmem:[#allocation7 + $0xd8] sm:$0xff]
    %v844 = vld [vmem:[#allocation7 + $0xe0] sm:$0xff]
    %v845 = vld [vmem:[#allocation7 + $0xe8] sm:$0xff]
    %v846 = vld [vmem:[#allocation7 + $0xf0] sm:$0xff]
    %v847 = vld [vmem:[#allocation7 + $0xf8] sm:$0xff]
    %v880 = vunpack.c.l.b16 %v816
    %v881 = vunpack.c.h.b16 %v816
    %v882 = vunpack.c.l.b16 %v817
    %v883 = vunpack.c.h.b16 %v817
    %v884 = vunpack.c.l.b16 %v818
    %v885 = vunpack.c.h.b16 %v818
    %v886 = vunpack.c.l.b16 %v819
    %v887 = vunpack.c.h.b16 %v819
    %v888 = vunpack.c.l.b16 %v820
    %v889 = vunpack.c.h.b16 %v820
    %v890 = vunpack.c.l.b16 %v821
    %v891 = vunpack.c.h.b16 %v821
    %v892 = vunpack.c.l.b16 %v822
    %v893 = vunpack.c.h.b16 %v822
    %v894 = vunpack.c.l.b16 %v823
    %v895 = vunpack.c.h.b16 %v823
    %v896 = vunpack.c.l.b16 %v824
    %v897 = vunpack.c.h.b16 %v824
    %v898 = vunpack.c.l.b16 %v825
    %v899 = vunpack.c.h.b16 %v825
    %v900 = vunpack.c.l.b16 %v826
    %v901 = vunpack.c.h.b16 %v826
    %v902 = vunpack.c.l.b16 %v827
    %v903 = vunpack.c.h.b16 %v827
    %v904 = vunpack.c.l.b16 %v828
    %v905 = vunpack.c.h.b16 %v828
    %v906 = vunpack.c.l.b16 %v829
    %v907 = vunpack.c.h.b16 %v829
    %v908 = vunpack.c.l.b16 %v830
    %v909 = vunpack.c.h.b16 %v830
    %v910 = vunpack.c.l.b16 %v831
    %v911 = vunpack.c.h.b16 %v831
    %v912 = vunpack.c.l.b16 %v832
    %v913 = vunpack.c.h.b16 %v832
    %v914 = vunpack.c.l.b16 %v833
    %v915 = vunpack.c.h.b16 %v833
    %v916 = vunpack.c.l.b16 %v834
    %v917 = vunpack.c.h.b16 %v834
    %v918 = vunpack.c.l.b16 %v835
    %v919 = vunpack.c.h.b16 %v835
    %v920 = vunpack.c.l.b16 %v836
    %v921 = vunpack.c.h.b16 %v836
    %v922 = vunpack.c.l.b16 %v837
    %v923 = vunpack.c.h.b16 %v837
    %v924 = vunpack.c.l.b16 %v838
    %v925 = vunpack.c.h.b16 %v838
    %v926 = vunpack.c.l.b16 %v839
    %v927 = vunpack.c.h.b16 %v839
    %v928 = vunpack.c.l.b16 %v840
    %v929 = vunpack.c.h.b16 %v840
    %v930 = vunpack.c.l.b16 %v841
    %v931 = vunpack.c.h.b16 %v841
    %v932 = vunpack.c.l.b16 %v842
    %v933 = vunpack.c.h.b16 %v842
    %v934 = vunpack.c.l.b16 %v843
    %v935 = vunpack.c.h.b16 %v843
    %v936 = vunpack.c.l.b16 %v844
    %v937 = vunpack.c.h.b16 %v844
    %v938 = vunpack.c.l.b16 %v845
    %v939 = vunpack.c.h.b16 %v845
    %v940 = vunpack.c.l.b16 %v846
    %v941 = vunpack.c.h.b16 %v846
    %v942 = vunpack.c.l.b16 %v847
    %v943 = vunpack.c.h.b16 %v847
    %v944 = vpack.c.b16 %v882, %v880
    %v945 = vpack.c.b16 %v883, %v881
    %v946 = vpack.c.b16 %v886, %v884
    %v947 = vpack.c.b16 %v887, %v885
    %v948 = vpack.c.b16 %v890, %v888
    %v949 = vpack.c.b16 %v891, %v889
    %v950 = vpack.c.b16 %v894, %v892
    %v951 = vpack.c.b16 %v895, %v893
    %v952 = vpack.c.b16 %v898, %v896
    %v953 = vpack.c.b16 %v899, %v897
    %v954 = vpack.c.b16 %v902, %v900
    %v955 = vpack.c.b16 %v903, %v901
    %v956 = vpack.c.b16 %v906, %v904
    %v957 = vpack.c.b16 %v907, %v905
    %v958 = vpack.c.b16 %v910, %v908
    %v959 = vpack.c.b16 %v911, %v909
    %v960 = vpack.c.b16 %v914, %v912
    %v961 = vpack.c.b16 %v915, %v913
    %v962 = vpack.c.b16 %v918, %v916
    %v963 = vpack.c.b16 %v919, %v917
    %v964 = vpack.c.b16 %v922, %v920
    %v965 = vpack.c.b16 %v923, %v921
    %v966 = vpack.c.b16 %v926, %v924
    %v967 = vpack.c.b16 %v927, %v925
    %v968 = vpack.c.b16 %v930, %v928
    %v969 = vpack.c.b16 %v931, %v929
    %v970 = vpack.c.b16 %v934, %v932
    %v971 = vpack.c.b16 %v935, %v933
    %v972 = vpack.c.b16 %v938, %v936
    %v973 = vpack.c.b16 %v939, %v937
    %v974 = vpack.c.b16 %v942, %v940
    %v975 = vpack.c.b16 %v943, %v941
    %1008 = vmatprep.subr.bf16.mxu0 %v959
    %1009 = vmatpush1.bf16.msra.mxu0 %v958
    %1010 = vmatprep.subr.bf16.mxu0 %v957
    %1011 = vmatpush1.bf16.msra.mxu0 %v956
    %1012 = vmatprep.subr.bf16.mxu0 %v955
    %1013 = vmatpush1.bf16.msra.mxu0 %v954
    %1014 = vmatprep.subr.bf16.mxu0 %v953
    %1015 = vmatpush1.bf16.msra.mxu0 %v952
    %1016 = vmatprep.subr.bf16.mxu0 %v951
    %1017 = vmatpush1.bf16.msra.mxu0 %v950
    %1018 = vmatprep.subr.bf16.mxu0 %v949
    %1019 = vmatpush1.bf16.msra.mxu0 %v948
    %1020 = vmatprep.subr.bf16.mxu0 %v947
    %1021 = vmatpush1.bf16.msra.mxu0 %v946
    %1022 = vmatprep.subr.bf16.mxu0 %v945
    %1023 = vmatpush1.bf16.msra.mxu0 %v944
    %1024 = vmatprep.subr.bf16.mxu0 %v975
    %1025 = vmatpush2.bf16.msra.mxu0 %v974
    %1026 = vmatprep.subr.bf16.mxu0 %v973
    %1027 = vmatpush2.bf16.msra.mxu0 %v972
    %1028 = vmatprep.subr.bf16.mxu0 %v971
    %1029 = vmatpush2.bf16.msra.mxu0 %v970
    %1030 = vmatprep.subr.bf16.mxu0 %v969
    %1031 = vmatpush2.bf16.msra.mxu0 %v968
    %1032 = vmatprep.subr.bf16.mxu0 %v967
    %1033 = vmatpush2.bf16.msra.mxu0 %v966
    %1034 = vmatprep.subr.bf16.mxu0 %v965
    %1035 = vmatpush2.bf16.msra.mxu0 %v964
    %1036 = vmatprep.subr.bf16.mxu0 %v963
    %1037 = vmatpush2.bf16.msra.mxu0 %v962
    %1038 = vmatprep.subr.bf16.mxu0 %v961
    %1039 = vmatpush2.bf16.msra.mxu0 %v960
    %1040 = vmatprep.mubr.bf16.mxu0 %v809
    %1041 = vmatmul.mubr.bf16.gmra.mxu0 %v808
    %v1042 = vpop.f32.mrf.mxu0
    %v1043 = vadd.f32 0.0, %v1042
    %v1044 = vpop.f32.mrf.mxu0
    %v1045 = vadd.f32 0.0, %v1044
    %v1046 = vpop.f32.mrf.mxu0
    %v1047 = vadd.f32 0.0, %v1046
    %v1048 = vpop.f32.mrf.mxu0
    %v1049 = vadd.f32 0.0, %v1048
    %1050 = vmatprep.mubr.bf16.mxu0 %v811
    %1051 = vmatmul.mubr.bf16.gmra.mxu0 %v810
    %v1052 = vpop.f32.mrf.mxu0
    %v1053 = vadd.f32 0.0, %v1052
    %v1054 = vpop.f32.mrf.mxu0
    %v1055 = vadd.f32 0.0, %v1054
    %v1056 = vpop.f32.mrf.mxu0
    %v1057 = vadd.f32 0.0, %v1056
    %v1058 = vpop.f32.mrf.mxu0
    %v1059 = vadd.f32 0.0, %v1058
    %1060 = vmatprep.mubr.bf16.mxu0 %v813
    %1061 = vmatmul.mubr.bf16.gmra.mxu0 %v812
    %v1062 = vpop.f32.mrf.mxu0
    %v1063 = vadd.f32 0.0, %v1062
    %v1064 = vpop.f32.mrf.mxu0
    %v1065 = vadd.f32 0.0, %v1064
    %v1066 = vpop.f32.mrf.mxu0
    %v1067 = vadd.f32 0.0, %v1066
    %v1068 = vpop.f32.mrf.mxu0
    %v1069 = vadd.f32 0.0, %v1068
    %1070 = vmatprep.mubr.bf16.mxu0 %v815
    %1071 = vmatmul.mubr.bf16.gmra.mxu0 %v814
    %v1072 = vpop.f32.mrf.mxu0
    %v1073 = vadd.f32 0.0, %v1072
    %v1074 = vpop.f32.mrf.mxu0
    %v1075 = vadd.f32 0.0, %v1074
    %v1076 = vpop.f32.mrf.mxu0
    %v1077 = vadd.f32 0.0, %v1076
    %v1078 = vpop.f32.mrf.mxu0
    %v1079 = vadd.f32 0.0, %v1078
    %1080 = vdwg.mxu0
    %v1083 = vcombine.low %v802, %v804
    %v1084 = vcombine.high %v802, %v804
    %v1086 = vunpack.c.l.s4 1966171168
    %v1087 = vunpack.c.0.s8 %v1086
    %v1088 = vlaneseq
    %v1089 = vshrl.u32 %v1088, 7
    %v1090 = vsub.s32 %v1087, %v1089
    %v1091 = vrot.slane %v1083, %v1090
    %v1093 = vunpack.c.l.s4 1966171168
    %v1094 = vunpack.c.0.s8 %v1093
    %v1095 = vlaneseq
    %v1096 = vshrl.u32 %v1095, 7
    %v1097 = vsub.s32 %v1094, %v1096
    %v1098 = vrot.slane %v1084, %v1097
    %v1099 = vcombine.high %v1091, %v1091
    %v1100 = vcombine.high %v1098, %v1098
    %v1102 = vunpack.c.l.s4 1966171168
    %v1103 = vunpack.c.0.s8 %v1102
    %v1104 = vlaneseq
    %v1105 = vshrl.u32 %v1104, 7
    %v1106 = vsub.s32 %v1103, %v1105
    %v1107 = vrot.slane %v1091, %v1106
    %v1109 = vunpack.c.l.s4 1966171168
    %v1110 = vunpack.c.0.s8 %v1109
    %v1111 = vlaneseq
    %v1112 = vshrl.u32 %v1111, 7
    %v1113 = vsub.s32 %v1110, %v1112
    %v1114 = vrot.slane %v1098, %v1113
    %v1116 = vunpack.c.l.s4 1966171168
    %v1117 = vunpack.c.0.s8 %v1116
    %v1118 = vlaneseq
    %v1119 = vshrl.u32 %v1118, 7
    %v1120 = vsub.s32 %v1117, %v1119
    %v1121 = vrot.slane %v1099, %v1120
    %v1123 = vunpack.c.l.s4 1966171168
    %v1124 = vunpack.c.0.s8 %v1123
    %v1125 = vlaneseq
    %v1126 = vshrl.u32 %v1125, 7
    %v1127 = vsub.s32 %v1124, %v1126
    %v1128 = vrot.slane %v1100, %v1127
    %v1129 = vcombine.high %v1107, %v1107
    %v1130 = vcombine.high %v1114, %v1114
    %v1131 = vcombine.high %v1121, %v1121
    %v1132 = vcombine.high %v1128, %v1128
    %v1133 = vlaneseq
    %v1134 = vshrl.u32 %v1133, 7
    %v1135 = vsub.s32 0, %v1134
    %v1136 = vrot.slane %v1107, %v1135
    %v1137 = vlaneseq
    %v1138 = vshrl.u32 %v1137, 7
    %v1139 = vsub.s32 1, %v1138
    %v1140 = vrot.slane %v1107, %v1139
    %v1141 = vlaneseq
    %v1142 = vshrl.u32 %v1141, 7
    %v1143 = vsub.s32 0, %v1142
    %v1144 = vrot.slane %v1121, %v1143
    %v1145 = vlaneseq
    %v1146 = vshrl.u32 %v1145, 7
    %v1147 = vsub.s32 1, %v1146
    %v1148 = vrot.slane %v1121, %v1147
    %v1149 = vlaneseq
    %v1150 = vshrl.u32 %v1149, 7
    %v1151 = vsub.s32 0, %v1150
    %v1152 = vrot.slane %v1129, %v1151
    %v1153 = vlaneseq
    %v1154 = vshrl.u32 %v1153, 7
    %v1155 = vsub.s32 1, %v1154
    %v1156 = vrot.slane %v1129, %v1155
    %v1157 = vlaneseq
    %v1158 = vshrl.u32 %v1157, 7
    %v1159 = vsub.s32 0, %v1158
    %v1160 = vrot.slane %v1131, %v1159
    %v1161 = vlaneseq
    %v1162 = vshrl.u32 %v1161, 7
    %v1163 = vsub.s32 1, %v1162
    %v1164 = vrot.slane %v1131, %v1163
    %v1165 = vlaneseq
    %v1166 = vshrl.u32 %v1165, 7
    %v1167 = vsub.s32 0, %v1166
    %v1168 = vrot.slane %v1114, %v1167
    %v1169 = vlaneseq
    %v1170 = vshrl.u32 %v1169, 7
    %v1171 = vsub.s32 1, %v1170
    %v1172 = vrot.slane %v1114, %v1171
    %v1173 = vlaneseq
    %v1174 = vshrl.u32 %v1173, 7
    %v1175 = vsub.s32 0, %v1174
    %v1176 = vrot.slane %v1128, %v1175
    %v1177 = vlaneseq
    %v1178 = vshrl.u32 %v1177, 7
    %v1179 = vsub.s32 1, %v1178
    %v1180 = vrot.slane %v1128, %v1179
    %v1181 = vlaneseq
    %v1182 = vshrl.u32 %v1181, 7
    %v1183 = vsub.s32 0, %v1182
    %v1184 = vrot.slane %v1130, %v1183
    %v1185 = vlaneseq
    %v1186 = vshrl.u32 %v1185, 7
    %v1187 = vsub.s32 1, %v1186
    %v1188 = vrot.slane %v1130, %v1187
    %v1189 = vlaneseq
    %v1190 = vshrl.u32 %v1189, 7
    %v1191 = vsub.s32 0, %v1190
    %v1192 = vrot.slane %v1132, %v1191
    %v1193 = vlaneseq
    %v1194 = vshrl.u32 %v1193, 7
    %v1195 = vsub.s32 1, %v1194
    %v1196 = vrot.slane %v1132, %v1195
    %v1213 = vadd.f32 %v1136, %v1043
    %v1214 = vadd.f32 %v1140, %v1045
    %v1215 = vadd.f32 %v1144, %v1047
    %v1216 = vadd.f32 %v1148, %v1049
    %v1217 = vadd.f32 %v1152, %v1053
    %v1218 = vadd.f32 %v1156, %v1055
    %v1219 = vadd.f32 %v1160, %v1057
    %v1220 = vadd.f32 %v1164, %v1059
    %v1221 = vadd.f32 %v1168, %v1063
    %v1222 = vadd.f32 %v1172, %v1065
    %v1223 = vadd.f32 %v1176, %v1067
    %v1224 = vadd.f32 %v1180, %v1069
    %v1225 = vadd.f32 %v1184, %v1073
    %v1226 = vadd.f32 %v1188, %v1075
    %v1227 = vadd.f32 %v1192, %v1077
    %v1228 = vadd.f32 %v1196, %v1079
    %v1229 = vld [vmem:[%s7] sm:$0x3]
    %v1231 = vlaneseq
    %v1232 = vshrl.u32 %v1231, 7
    %v1233 = vsub.s32 0, %v1232
    %v1234 = vrot.slane %v1229, %v1233
    %v1235 = vlaneseq
    %v1236 = vshrl.u32 %v1235, 7
    %v1237 = vsub.s32 1, %v1236
    %v1238 = vrot.slane %v1229, %v1237
    %v1241 = vadd.f32 %v1213, %v1234
    %v1242 = vadd.f32 %v1214, %v1238
    %v1243 = vadd.f32 %v1215, %v1234
    %v1244 = vadd.f32 %v1216, %v1238
    %v1245 = vadd.f32 %v1217, %v1234
    %v1246 = vadd.f32 %v1218, %v1238
    %v1247 = vadd.f32 %v1219, %v1234
    %v1248 = vadd.f32 %v1220, %v1238
    %v1249 = vadd.f32 %v1221, %v1234
    %v1250 = vadd.f32 %v1222, %v1238
    %v1251 = vadd.f32 %v1223, %v1234
    %v1252 = vadd.f32 %v1224, %v1238
    %v1253 = vadd.f32 %v1225, %v1234
    %v1254 = vadd.f32 %v1226, %v1238
    %v1255 = vadd.f32 %v1227, %v1234
    %v1256 = vadd.f32 %v1228, %v1238
    %v1257 = vmax.f32 %v1241, 0.0
    %v1258 = vmax.f32 %v1242, 0.0
    %v1259 = vmax.f32 %v1243, 0.0
    %v1260 = vmax.f32 %v1244, 0.0
    %v1261 = vmax.f32 %v1245, 0.0
    %v1262 = vmax.f32 %v1246, 0.0
    %v1263 = vmax.f32 %v1247, 0.0
    %v1264 = vmax.f32 %v1248, 0.0
    %v1265 = vmax.f32 %v1249, 0.0
    %v1266 = vmax.f32 %v1250, 0.0
    %v1267 = vmax.f32 %v1251, 0.0
    %v1268 = vmax.f32 %v1252, 0.0
    %v1269 = vmax.f32 %v1253, 0.0
    %v1270 = vmax.f32 %v1254, 0.0
    %v1271 = vmax.f32 %v1255, 0.0
    %v1272 = vmax.f32 %v1256, 0.0
    %v1273 = vpack.c.bf16 %v1259, %v1257
    %v1274 = vpack.c.bf16 %v1260, %v1258
    %v1275 = vpack.c.bf16 %v1263, %v1261
    %v1276 = vpack.c.bf16 %v1264, %v1262
    %v1277 = vpack.c.bf16 %v1267, %v1265
    %v1278 = vpack.c.bf16 %v1268, %v1266
    %v1279 = vpack.c.bf16 %v1271, %v1269
    %v1280 = vpack.c.bf16 %v1272, %v1270
    %v1281 = vld [vmem:[#allocation8] sm:$0xf]
    %v1282 = vld [vmem:[#allocation8 + $0x4] sm:$0xf]
    %v1283 = vld [vmem:[#allocation8 + $0x8] sm:$0xf]
    %v1284 = vld [vmem:[#allocation8 + $0xc] sm:$0xf]
    %v1285 = vld [vmem:[#allocation8 + $0x10] sm:$0xf]
    %v1286 = vld [vmem:[#allocation8 + $0x14] sm:$0xf]
    %v1287 = vld [vmem:[#allocation8 + $0x18] sm:$0xf]
    %v1288 = vld [vmem:[#allocation8 + $0x1c] sm:$0xf]
    %v1289 = vld [vmem:[#allocation8 + $0x20] sm:$0xf]
    %v1290 = vld [vmem:[#allocation8 + $0x24] sm:$0xf]
    %v1291 = vld [vmem:[#allocation8 + $0x28] sm:$0xf]
    %v1292 = vld [vmem:[#allocation8 + $0x2c] sm:$0xf]
    %v1293 = vld [vmem:[#allocation8 + $0x30] sm:$0xf]
    %v1294 = vld [vmem:[#allocation8 + $0x34] sm:$0xf]
    %v1295 = vld [vmem:[#allocation8 + $0x38] sm:$0xf]
    %v1296 = vld [vmem:[#allocation8 + $0x3c] sm:$0xf]
    %v1297 = vld [vmem:[#allocation8 + $0x40] sm:$0xf]
    %v1298 = vld [vmem:[#allocation8 + $0x44] sm:$0xf]
    %v1299 = vld [vmem:[#allocation8 + $0x48] sm:$0xf]
    %v1300 = vld [vmem:[#allocation8 + $0x4c] sm:$0xf]
    %v1301 = vld [vmem:[#allocation8 + $0x50] sm:$0xf]
    %v1302 = vld [vmem:[#allocation8 + $0x54] sm:$0xf]
    %v1303 = vld [vmem:[#allocation8 + $0x58] sm:$0xf]
    %v1304 = vld [vmem:[#allocation8 + $0x5c] sm:$0xf]
    %v1305 = vld [vmem:[#allocation8 + $0x60] sm:$0xf]
    %v1306 = vld [vmem:[#allocation8 + $0x64] sm:$0xf]
    %v1307 = vld [vmem:[#allocation8 + $0x68] sm:$0xf]
    %v1308 = vld [vmem:[#allocation8 + $0x6c] sm:$0xf]
    %v1309 = vld [vmem:[#allocation8 + $0x70] sm:$0xf]
    %v1310 = vld [vmem:[#allocation8 + $0x74] sm:$0xf]
    %v1311 = vld [vmem:[#allocation8 + $0x78] sm:$0xf]
    %v1312 = vld [vmem:[#allocation8 + $0x7c] sm:$0xf]
    %v1313 = vld [vmem:[%s9] sm:$0x1]
    %v1315 = vlaneseq
    %v1316 = vshrl.u32 %v1315, 7
    %v1317 = vsub.s32 0, %v1316
    %v1318 = vrot.slane %v1313, %v1317
    %v1352 = vunpack.c.l.b16 %v1281
    %v1353 = vunpack.c.l.b16 %v1282
    %v1354 = vunpack.c.l.b16 %v1283
    %v1355 = vunpack.c.l.b16 %v1284
    %v1356 = vunpack.c.l.b16 %v1285
    %v1357 = vunpack.c.l.b16 %v1286
    %v1358 = vunpack.c.l.b16 %v1287
    %v1359 = vunpack.c.l.b16 %v1288
    %v1360 = vunpack.c.l.b16 %v1289
    %v1361 = vunpack.c.l.b16 %v1290
    %v1362 = vunpack.c.l.b16 %v1291
    %v1363 = vunpack.c.l.b16 %v1292
    %v1364 = vunpack.c.l.b16 %v1293
    %v1365 = vunpack.c.l.b16 %v1294
    %v1366 = vunpack.c.l.b16 %v1295
    %v1367 = vunpack.c.l.b16 %v1296
    %v1368 = vunpack.c.l.b16 %v1297
    %v1369 = vunpack.c.l.b16 %v1298
    %v1370 = vunpack.c.l.b16 %v1299
    %v1371 = vunpack.c.l.b16 %v1300
    %v1372 = vunpack.c.l.b16 %v1301
    %v1373 = vunpack.c.l.b16 %v1302
    %v1374 = vunpack.c.l.b16 %v1303
    %v1375 = vunpack.c.l.b16 %v1304
    %v1376 = vunpack.c.l.b16 %v1305
    %v1377 = vunpack.c.l.b16 %v1306
    %v1378 = vunpack.c.l.b16 %v1307
    %v1379 = vunpack.c.l.b16 %v1308
    %v1380 = vunpack.c.l.b16 %v1309
    %v1381 = vunpack.c.l.b16 %v1310
    %v1382 = vunpack.c.l.b16 %v1311
    %v1383 = vunpack.c.l.b16 %v1312
    %v1384 = vpack.c.b16 %v1353, %v1352
    %v1385 = vpack.c.b16 %v1355, %v1354
    %v1386 = vpack.c.b16 %v1357, %v1356
    %v1387 = vpack.c.b16 %v1359, %v1358
    %v1388 = vpack.c.b16 %v1361, %v1360
    %v1389 = vpack.c.b16 %v1363, %v1362
    %v1390 = vpack.c.b16 %v1365, %v1364
    %v1391 = vpack.c.b16 %v1367, %v1366
    %v1392 = vpack.c.b16 %v1369, %v1368
    %v1393 = vpack.c.b16 %v1371, %v1370
    %v1394 = vpack.c.b16 %v1373, %v1372
    %v1395 = vpack.c.b16 %v1375, %v1374
    %v1396 = vpack.c.b16 %v1377, %v1376
    %v1397 = vpack.c.b16 %v1379, %v1378
    %v1398 = vpack.c.b16 %v1381, %v1380
    %v1399 = vpack.c.b16 %v1383, %v1382
    %1416 = vmatprep.subr.bf16.mxu0 0
    %1417 = vmatpush1.bf16.msra.mxu0 %v1391
    %1418 = vmatprep.subr.bf16.mxu0 0
    %1419 = vmatpush1.bf16.msra.mxu0 %v1390
    %1420 = vmatprep.subr.bf16.mxu0 0
    %1421 = vmatpush1.bf16.msra.mxu0 %v1389
    %1422 = vmatprep.subr.bf16.mxu0 0
    %1423 = vmatpush1.bf16.msra.mxu0 %v1388
    %1424 = vmatprep.subr.bf16.mxu0 0
    %1425 = vmatpush1.bf16.msra.mxu0 %v1387
    %1426 = vmatprep.subr.bf16.mxu0 0
    %1427 = vmatpush1.bf16.msra.mxu0 %v1386
    %1428 = vmatprep.subr.bf16.mxu0 0
    %1429 = vmatpush1.bf16.msra.mxu0 %v1385
    %1430 = vmatprep.subr.bf16.mxu0 0
    %1431 = vmatpush1.bf16.msra.mxu0 %v1384
    %1432 = vmatprep.subr.bf16.mxu0 0
    %1433 = vmatpush2.bf16.msra.mxu0 %v1399
    %1434 = vmatprep.subr.bf16.mxu0 0
    %1435 = vmatpush2.bf16.msra.mxu0 %v1398
    %1436 = vmatprep.subr.bf16.mxu0 0
    %1437 = vmatpush2.bf16.msra.mxu0 %v1397
    %1438 = vmatprep.subr.bf16.mxu0 0
    %1439 = vmatpush2.bf16.msra.mxu0 %v1396
    %1440 = vmatprep.subr.bf16.mxu0 0
    %1441 = vmatpush2.bf16.msra.mxu0 %v1395
    %1442 = vmatprep.subr.bf16.mxu0 0
    %1443 = vmatpush2.bf16.msra.mxu0 %v1394
    %1444 = vmatprep.subr.bf16.mxu0 0
    %1445 = vmatpush2.bf16.msra.mxu0 %v1393
    %1446 = vmatprep.subr.bf16.mxu0 0
    %1447 = vmatpush2.bf16.msra.mxu0 %v1392
    %1448 = vmatprep.mubr.bf16.mxu0 %v1274
    %1449 = vmatmul.mubr.bf16.gmra.mxu0 %v1273
    %v1450 = vpop.f32.mrf.mxu0
    %v1451 = vadd.f32 %v1318, %v1450
    %v1452 = vpop.f32.mrf.mxu0
    %v1453 = vpop.f32.mrf.mxu0
    %v1454 = vadd.f32 %v1318, %v1453
    %v1455 = vpop.f32.mrf.mxu0
    %1456 = vmatprep.mubr.bf16.mxu0 %v1276
    %1457 = vmatmul.mubr.bf16.gmra.mxu0 %v1275
    %v1458 = vpop.f32.mrf.mxu0
    %v1459 = vadd.f32 %v1318, %v1458
    %v1460 = vpop.f32.mrf.mxu0
    %v1461 = vpop.f32.mrf.mxu0
    %v1462 = vadd.f32 %v1318, %v1461
    %v1463 = vpop.f32.mrf.mxu0
    %1464 = vmatprep.mubr.bf16.mxu0 %v1278
    %1465 = vmatmul.mubr.bf16.gmra.mxu0 %v1277
    %v1466 = vpop.f32.mrf.mxu0
    %v1467 = vadd.f32 %v1318, %v1466
    %v1468 = vpop.f32.mrf.mxu0
    %v1469 = vpop.f32.mrf.mxu0
    %v1470 = vadd.f32 %v1318, %v1469
    %v1471 = vpop.f32.mrf.mxu0
    %1472 = vmatprep.mubr.bf16.mxu0 %v1280
    %1473 = vmatmul.mubr.bf16.gmra.mxu0 %v1279
    %v1474 = vpop.f32.mrf.mxu0
    %v1475 = vadd.f32 %v1318, %v1474
    %v1476 = vpop.f32.mrf.mxu0
    %v1477 = vpop.f32.mrf.mxu0
    %v1478 = vadd.f32 %v1318, %v1477
    %v1479 = vpop.f32.mrf.mxu0
    %1480 = vdwg.mxu0
    %v1481 = vrot.slane %v1451, 4
    %v1482 = vmax.f32 %v1451, %v1481
    %v1483 = vrot.slane %v1482, 2
    %v1484 = vmax.f32 %v1482, %v1483
    %v1485 = vrot.slane %v1484, 1
    %v1486 = vmax.f32 %v1484, %v1485
    %v1487 = vrot.slane %v1454, 4
    %v1488 = vmax.f32 %v1454, %v1487
    %v1489 = vrot.slane %v1488, 2
    %v1490 = vmax.f32 %v1488, %v1489
    %v1491 = vrot.slane %v1490, 1
    %v1492 = vmax.f32 %v1490, %v1491
    %v1493 = vrot.slane %v1459, 4
    %v1494 = vmax.f32 %v1459, %v1493
    %v1495 = vrot.slane %v1494, 2
    %v1496 = vmax.f32 %v1494, %v1495
    %v1497 = vrot.slane %v1496, 1
    %v1498 = vmax.f32 %v1496, %v1497
    %v1499 = vrot.slane %v1462, 4
    %v1500 = vmax.f32 %v1462, %v1499
    %v1501 = vrot.slane %v1500, 2
    %v1502 = vmax.f32 %v1500, %v1501
    %v1503 = vrot.slane %v1502, 1
    %v1504 = vmax.f32 %v1502, %v1503
    %v1505 = vrot.slane %v1467, 4
    %v1506 = vmax.f32 %v1467, %v1505
    %v1507 = vrot.slane %v1506, 2
    %v1508 = vmax.f32 %v1506, %v1507
    %v1509 = vrot.slane %v1508, 1
    %v1510 = vmax.f32 %v1508, %v1509
    %v1511 = vrot.slane %v1470, 4
    %v1512 = vmax.f32 %v1470, %v1511
    %v1513 = vrot.slane %v1512, 2
    %v1514 = vmax.f32 %v1512, %v1513
    %v1515 = vrot.slane %v1514, 1
    %v1516 = vmax.f32 %v1514, %v1515
    %v1517 = vrot.slane %v1475, 4
    %v1518 = vmax.f32 %v1475, %v1517
    %v1519 = vrot.slane %v1518, 2
    %v1520 = vmax.f32 %v1518, %v1519
    %v1521 = vrot.slane %v1520, 1
    %v1522 = vmax.f32 %v1520, %v1521
    %v1523 = vrot.slane %v1478, 4
    %v1524 = vmax.f32 %v1478, %v1523
    %v1525 = vrot.slane %v1524, 2
    %v1526 = vmax.f32 %v1524, %v1525
    %v1527 = vrot.slane %v1526, 1
    %v1528 = vmax.f32 %v1526, %v1527
    %v1537 = vsel %vm582, %v1492, %v1486
    %v1538 = vsel %vm584, %v1498, %v1537
    %v1539 = vsel %vm586, %v1504, %v1538
    %v1540 = vsel %vm588, %v1510, %v1539
    %v1541 = vsel %vm590, %v1516, %v1540
    %v1542 = vsel %vm592, %v1522, %v1541
    %v1543 = vsel %vm594, %v1528, %v1542
    %1545 = vst [vmem:[#allocation10] sm:$0xff] %v1543
    // Predicated region
    $region58: #{tpu_custom_call.1} parent=1 // pred_check
      _
    $region59: #{tpu_custom_call.1} parent=1 // pred_check_branch
      %1547 = sbr.rel (0) target = $region61
    $region60: #{tpu_custom_call.1} parent=1 // pred_region
      %s1549 = ssub.s32 128, 128
      %1550 = vsyncadd [#allocation4], %s1549
      %s1552 = sshll.u32 [#allocation10], 4
      %s1553 = int_to_ptr.vmem [resolvable:$true] %s1552
      %1555 = dma.vmem_to_hbm [thread:$0]  %s1553, 128, %s10, [#allocation4]
    $region61: #{tpu_custom_call.1} parent=1 // pred_fallthru
      _
    // Predicated region
    $region62: #{tpu_custom_call.1} parent=1 // pred_check
      _
    $region63: #{tpu_custom_call.1} parent=1 // pred_check_branch
      %1557 = sbr.rel (0) target = $region65
    $region64: #{tpu_custom_call.1} parent=1 // pred_region
      %1558 = dma.done [#allocation4], 128
    $region65: #{tpu_custom_call.1} parent=1 // pred_fallthru
      _
    %1559 = vsyncpa [#allocation3], 1
    %1560 = vsyncpa [#allocation6], 1
    %1561 = vsyncpa [#allocation9], 1
    %1562 = vsyncpa [#allocation4], 1

</llo_original>
